<compile_context>
chip_gen: v7x
topology: tpu7x:2x2x1
jax: 0.10.0
libtpu: 0.0.40
codegen_flags: <defaults>
</compile_context>

<pallas_src>
import functools

import jax
import jax.numpy as jnp
from jax.experimental import pallas as pl
from jax.experimental.pallas import tpu as pltpu

EPS = 1e-6
NUM_GROUPS = 4
NUM_BITS = 8
QMAX = float(2 ** NUM_BITS - 1)


def _rmsnorm(x, w):
    # Llama RMSNorm: fp32 variance, scale by weight.
    var = jnp.mean(x * x, axis=-1, keepdims=True)
    return x * jax.lax.rsqrt(var + EPS) * w


# ----------------- pass 1: per-column min/max of RMSNorm(x) -----------------
def _minmax_kernel(x_ref, ln1_ref, min_ref, max_ref):
    @pl.when(pl.program_id(0) == 0)
    def _():
        min_ref[...] = jnp.full(min_ref.shape, jnp.inf, min_ref.dtype)
        max_ref[...] = jnp.full(max_ref.shape, -jnp.inf, max_ref.dtype)

    h = _rmsnorm(x_ref[...], ln1_ref[...])
    min_ref[...] = jnp.minimum(min_ref[...], jnp.min(h, axis=0, keepdims=True))
    max_ref[...] = jnp.maximum(max_ref[...], jnp.max(h, axis=0, keepdims=True))


# ------------- pass 2: quant apply + residual + RMSNorm + MLP ---------------
def _apply_mlp_kernel(x_ref, ln1_ref, ln2_ref, gmin_ref, inv_ref,
                      wg_ref, wu_ref, wd_ref, o_ref,
                      acc_ref, h_ref, n_ref):
    k = pl.program_id(1)

    @pl.when(k == 0)
    def _():
        x = x_ref[...]
        hn = _rmsnorm(x, ln1_ref[...])
        # single-pass quant: broadcast (1, H) gmin / inv_scale vectors
        quant = jnp.round((hn - gmin_ref[...]) * inv_ref[...])
        h = x + quant
        h_ref[...] = h
        n_ref[...] = _rmsnorm(h, ln2_ref[...]).astype(n_ref.dtype)
        acc_ref[...] = jnp.zeros_like(acc_ref)

    n = n_ref[...]                                                  # bf16
    gate = jnp.dot(n, wg_ref[...], preferred_element_type=jnp.float32)
    up = jnp.dot(n, wu_ref[...], preferred_element_type=jnp.float32)
    act = gate * jax.nn.sigmoid(gate)                               # SiLU, f32
    acc_ref[...] += jnp.dot((act * up).astype(wd_ref.dtype), wd_ref[...],
                            preferred_element_type=jnp.float32)

    @pl.when(k == pl.num_programs(1) - 1)
    def _():
        o_ref[...] = (h_ref[...] + acc_ref[...]).astype(o_ref.dtype)


@functools.partial(
    jax.jit, static_argnames=("block_rows", "block_inter", "vmem_limit_bytes"))
def decoder_layer(x, ln1_w, ln2_w, w_gate, w_up, w_down,
                  *, block_rows=256, block_inter=512, vmem_limit_bytes=None):
    """Fused decoder layer.  block_rows / block_inter are the (rows, I) tile
    sizes; defaults suit v5e/v6e (halve block_inter or set vmem_limit_bytes
    for v7x's 64 MiB VMEM)."""
    B, S, H = x.shape
    R = B * S
    I = w_gate.shape[1]
    TR = min(block_rows, R)
    TI = min(block_inter, I)
    assert R % TR == 0 and I % TI == 0, "pad rows / intermediate to tile size"
    assert TR % 8 == 0 and H % 128 == 0 and TI % 128 == 0

    x2 = x.reshape(R, H).astype(jnp.float32)
    ln1 = ln1_w.reshape(1, H).astype(jnp.float32)
    ln2 = ln2_w.reshape(1, H).astype(jnp.float32)

    # ---- pass 1: column-wise min/max of RMSNorm(x), reduced over row tiles --
    col_min, col_max = pl.pallas_call(
        _minmax_kernel,
        out_shape=(jax.ShapeDtypeStruct((1, H), jnp.float32),
                   jax.ShapeDtypeStruct((1, H), jnp.float32)),
        grid=(R // TR,),
        in_specs=[pl.BlockSpec((TR, H), lambda i: (i, 0)),
                  pl.BlockSpec((1, H), lambda i: (0, 0))],
        out_specs=(pl.BlockSpec((1, H), lambda i: (0, 0)),
                   pl.BlockSpec((1, H), lambda i: (0, 0))),
        compiler_params=pltpu.CompilerParams(
            dimension_semantics=("arbitrary",),
            vmem_limit_bytes=vmem_limit_bytes),
    )(x2, ln1)

    # ---- tiny glue: per-group scalars -> (1, H) broadcast vectors ----------
    gs = H // NUM_GROUPS
    gmin = jnp.min(col_min.reshape(NUM_GROUPS, gs), axis=1)
    gmax = jnp.max(col_max.reshape(NUM_GROUPS, gs), axis=1)
    rng = gmax - gmin
    # TODO(synk): torch divides by scale and yields NaN/Inf for a constant
    # group (gmax == gmin); we define quant := 0 in that degenerate case.
    inv_scale = jnp.where(rng == 0.0, 0.0,
                          QMAX / jnp.where(rng == 0.0, 1.0, rng))
    gmin_vec = jnp.repeat(gmin, gs).reshape(1, H)
    inv_vec = jnp.repeat(inv_scale, gs).reshape(1, H)

    # bf16 weights: native MXU path on all generations, half the weight HBM
    # traffic; accumulation stays f32 via preferred_element_type.
    wg = w_gate.astype(jnp.bfloat16)
    wu = w_up.astype(jnp.bfloat16)
    wd = w_down.astype(jnp.bfloat16)

    cost = pl.CostEstimate(
        flops=6 * R * H * I,
        transcendentals=R * I,
        bytes_accessed=2 * R * H * 4 + 3 * H * I * 2)

    out = pl.pallas_call(
        _apply_mlp_kernel,
        out_shape=jax.ShapeDtypeStruct((R, H), x.dtype),
        grid=(R // TR, I // TI),                     # rows parallel, I reduced
        in_specs=[
            pl.BlockSpec((TR, H), lambda i, k: (i, 0)),    # x row tile
            pl.BlockSpec((1, H), lambda i, k: (0, 0)),     # ln1 (resident)
            pl.BlockSpec((1, H), lambda i, k: (0, 0)),     # ln2 (resident)
            pl.BlockSpec((1, H), lambda i, k: (0, 0)),     # gmin vector
            pl.BlockSpec((1, H), lambda i, k: (0, 0)),     # inv_scale vector
            pl.BlockSpec((H, TI), lambda i, k: (0, k)),    # gate_proj slice
            pl.BlockSpec((H, TI), lambda i, k: (0, k)),    # up_proj slice
            pl.BlockSpec((TI, H), lambda i, k: (k, 0)),    # down_proj slice
        ],
        out_specs=pl.BlockSpec((TR, H), lambda i, k: (i, 0)),
        scratch_shapes=[
            pltpu.VMEM((TR, H), jnp.float32),    # down-proj f32 accumulator
            pltpu.VMEM((TR, H), jnp.float32),    # residual h (post quant-add)
            pltpu.VMEM((TR, H), jnp.bfloat16),   # post-attn RMSNorm activations
        ],
        compiler_params=pltpu.CompilerParams(
            dimension_semantics=("parallel", "arbitrary"),
            vmem_limit_bytes=vmem_limit_bytes),
        cost_estimate=cost,
    )(x2, ln1, ln2, gmin_vec, inv_vec, wg, wu, wd)

    return out.reshape(B, S, H)


def decoder_layer_reference(x, ln1_w, ln2_w, w_gate, w_up, w_down):
    """Pure-JAX f32 reference mirroring the PyTorch forward."""
    def rmsnorm(v, w):
        var = jnp.mean(v * v, axis=-1, keepdims=True)
        return v * jax.lax.rsqrt(var + EPS) * w

    residual = x
    h = rmsnorm(x, ln1_w)
    H = x.shape[-1]
    gs = H // NUM_GROUPS
    quant = jnp.zeros_like(h)
    for g in range(NUM_GROUPS):
        grp = h[..., g * gs:(g + 1) * gs]
        gmin, gmax = jnp.min(grp), jnp.max(grp)
        inv_scale = QMAX / (gmax - gmin)   # == 1/((gmax-gmin)/255) up to 1 ulp
        quant = quant.at[..., g * gs:(g + 1) * gs].set(
            jnp.round((grp - gmin) * inv_scale))
    h = residual + quant
    residual = h
    n = rmsnorm(h, ln2_w)
    gate = n @ w_gate
    up = n @ w_up
    return residual + (gate * jax.nn.sigmoid(gate) * up) @ w_down


if __name__ == "__main__":
    # Small Llama-like config: batch=2, seq=16, hidden=128, intermediate=512.
    B, S, H, I = 2, 16, 128, 512

    key = jax.random.PRNGKey(0)
    kx, k1, k2, kg, ku, kd = jax.random.split(key, 6)

    x = jax.random.normal(kx, (B, S, H), dtype=jnp.float32)
    ln1_w = 1.0 + 0.01 * jax.random.normal(k1, (H,), dtype=jnp.float32)
    ln2_w = 1.0 + 0.01 * jax.random.normal(k2, (H,), dtype=jnp.float32)
    # MLP weights stored transposed (in_features, out_features) for x @ W.
    w_gate = 0.02 * jax.random.normal(kg, (H, I), dtype=jnp.float32)
    w_up = 0.02 * jax.random.normal(ku, (H, I), dtype=jnp.float32)
    w_down = 0.02 * jax.random.normal(kd, (I, H), dtype=jnp.float32)

    # TODO(synk): q/k/v/o projections and rotary embeddings exist in __init__
    # but are unused by this module's forward, so they are not materialized.

    # Small tiles so the toy run exercises a real (2 row tiles x 2 k tiles)
    # grid; production defaults are block_rows=256, block_inter=512.
    out = decoder_layer(x, ln1_w, ln2_w, w_gate, w_up, w_down,
                        block_rows=16, block_inter=256)
    out = jax.block_until_ready(out)

    ref = decoder_layer_reference(x, ln1_w, ln2_w, w_gate, w_up, w_down)
    assert out.shape == (B, S, H)

    err = jnp.abs(out - ref)
    # bf16 MXU path (f32 accumulation) vs f32 reference gives a small smooth
    # error; additionally, Pallas-vs-XLA fp reassociation in RMSNorm can flip
    # round() at an exact 8-bit quant boundary for a stray element (an
    # off-by-one integer code).  Allow a handful of such flips, require
    # everything else to be tight.
    flips = err > 0.1
    n_flips = int(jnp.sum(flips))
    smooth_err = float(jnp.max(jnp.where(flips, 0.0, err)))
    assert n_flips <= 8, f"{n_flips} quant-boundary mismatches"
    assert float(jnp.max(err)) < 1.5, f"max abs err {float(jnp.max(err))}"
    assert smooth_err < 5e-2, f"smooth max err {smooth_err}"

    print("KERNEL_OK")
</pallas_src>

<mosaic_0001>
module attributes {stable_mosaic.version = 11 : i64} {
  func.func @_minmax_kernel(%arg0: i32, %arg1: memref<16x128xf32, #tpu.memory_space<vmem>>, %arg2: memref<1x128xf32, #tpu.memory_space<vmem>>, %arg3: memref<1x128xf32, #tpu.memory_space<vmem>>, %arg4: memref<1x128xf32, #tpu.memory_space<vmem>>) attributes {dimension_semantics = [#tpu.dimension_semantics<arbitrary>], iteration_bounds = array<i64: 2>, scalar_prefetch = 0 : i64, scratch_operands = 0 : i64, tpu.core_type = #tpu.core_type<tc>, window_params = [{transform_indices = @transform_0, window_bounds = array<i64: 16, 128>}, {pipeline_mode = #tpu.pipeline_mode<synchronous>, transform_indices = @transform_1, window_bounds = array<i64: 1, 128>}, {pipeline_mode = #tpu.pipeline_mode<synchronous>, transform_indices = @transform_2, window_bounds = array<i64: 1, 128>}, {pipeline_mode = #tpu.pipeline_mode<synchronous>, transform_indices = @transform_3, window_bounds = array<i64: 1, 128>}]} {
    %c0_i32 = arith.constant 0 : i32
    %0 = arith.cmpi eq, %arg0, %c0_i32 : i32
    %1 = arith.extui %0 : i1 to i32
    %c0_i32_0 = arith.constant 0 : i32
    %2 = arith.cmpi ne, %1, %c0_i32_0 : i32
    scf.if %2 {
      %cst_16 = arith.constant 0x7F800000 : f32
      %27 = vector.broadcast %cst_16 : f32 to vector<1x128xf32>
      %c0_17 = arith.constant 0 : index
      %c0_18 = arith.constant 0 : index
      %28 = vector.load %arg3[%c0_17, %c0_18] : memref<1x128xf32, #tpu.memory_space<vmem>>, vector<1x128xf32>
      tpu.vector_store %arg3[%c0_17, %c0_18], %27 {strides = array<i32>} : memref<1x128xf32, #tpu.memory_space<vmem>>, vector<1x128xf32>,
      %cst_19 = arith.constant 0xFF800000 : f32
      %29 = vector.broadcast %cst_19 : f32 to vector<1x128xf32>
      %c0_20 = arith.constant 0 : index
      %c0_21 = arith.constant 0 : index
      %30 = vector.load %arg4[%c0_20, %c0_21] : memref<1x128xf32, #tpu.memory_space<vmem>>, vector<1x128xf32>
      tpu.vector_store %arg4[%c0_20, %c0_21], %29 {strides = array<i32>} : memref<1x128xf32, #tpu.memory_space<vmem>>, vector<1x128xf32>,
    } else {
    }
    %c0 = arith.constant 0 : index
    %c0_1 = arith.constant 0 : index
    %3 = vector.load %arg1[%c0, %c0_1] : memref<16x128xf32, #tpu.memory_space<vmem>>, vector<16x128xf32>
    %c0_2 = arith.constant 0 : index
    %c0_3 = arith.constant 0 : index
    %4 = vector.load %arg2[%c0_2, %c0_3] : memref<1x128xf32, #tpu.memory_space<vmem>>, vector<1x128xf32>
    %5 = arith.mulf %3, %3 : vector<16x128xf32>
    %cst = arith.constant dense<0.000000e+00> : vector<16xf32>
    %6 = vector.multi_reduction <add>, %5, %cst [1] : vector<16x128xf32> to vector<16xf32>
    %7 = vector.shape_cast %6 : vector<16xf32> to vector<16x1xf32>
    %cst_4 = arith.constant 1.280000e+02 : f32
    %8 = vector.broadcast %cst_4 : f32 to vector<16x1xf32>
    %9 = arith.divf %7, %8 : vector<16x1xf32>
    %cst_5 = arith.constant 9.99999997E-7 : f32
    %10 = vector.broadcast %cst_5 : f32 to vector<16x1xf32>
    %11 = arith.addf %9, %10 : vector<16x1xf32>
    %12 = math.rsqrt %11 : vector<16x1xf32>
    %13 = vector.broadcast %12 : vector<16x1xf32> to vector<16x128xf32>
    %14 = arith.mulf %3, %13 : vector<16x128xf32>
    %15 = vector.broadcast %4 : vector<1x128xf32> to vector<16x128xf32>
    %16 = arith.mulf %14, %15 : vector<16x128xf32>
    %c0_6 = arith.constant 0 : index
    %c0_7 = arith.constant 0 : index
    %17 = vector.load %arg3[%c0_6, %c0_7] : memref<1x128xf32, #tpu.memory_space<vmem>>, vector<1x128xf32>
    %cst_8 = arith.constant dense<0x7F800000> : vector<128xf32>
    %18 = vector.multi_reduction <minimumf>, %16, %cst_8 [0] : vector<16x128xf32> to vector<128xf32>
    %19 = vector.shape_cast %18 : vector<128xf32> to vector<1x128xf32>
    %20 = arith.minimumf %17, %19 : vector<1x128xf32>
    %c0_9 = arith.constant 0 : index
    %c0_10 = arith.constant 0 : index
    %21 = vector.load %arg3[%c0_9, %c0_10] : memref<1x128xf32, #tpu.memory_space<vmem>>, vector<1x128xf32>
    tpu.vector_store %arg3[%c0_9, %c0_10], %20 {strides = array<i32>} : memref<1x128xf32, #tpu.memory_space<vmem>>, vector<1x128xf32>,
    %c0_11 = arith.constant 0 : index
    %c0_12 = arith.constant 0 : index
    %22 = vector.load %arg4[%c0_11, %c0_12] : memref<1x128xf32, #tpu.memory_space<vmem>>, vector<1x128xf32>
    %cst_13 = arith.constant dense<0xFF800000> : vector<128xf32>
    %23 = vector.multi_reduction <maximumf>, %16, %cst_13 [0] : vector<16x128xf32> to vector<128xf32>
    %24 = vector.shape_cast %23 : vector<128xf32> to vector<1x128xf32>
    %25 = arith.maximumf %22, %24 : vector<1x128xf32>
    %c0_14 = arith.constant 0 : index
    %c0_15 = arith.constant 0 : index
    %26 = vector.load %arg4[%c0_14, %c0_15] : memref<1x128xf32, #tpu.memory_space<vmem>>, vector<1x128xf32>
    tpu.vector_store %arg4[%c0_14, %c0_15], %25 {strides = array<i32>} : memref<1x128xf32, #tpu.memory_space<vmem>>, vector<1x128xf32>,
    return
  }
  func.func @transform_0(%arg0: i32) -> (i32, i32) {
    %c0_i32 = arith.constant 0 : i32
    %c0_i32_0 = arith.constant 0 : i32
    return %arg0, %c0_i32 : i32, i32
  }
  func.func @transform_1(%arg0: i32) -> (i32, i32) {
    %c0_i32 = arith.constant 0 : i32
    %c0_i32_0 = arith.constant 0 : i32
    %c0_i32_1 = arith.constant 0 : i32
    return %c0_i32, %c0_i32_0 : i32, i32
  }
  func.func @transform_2(%arg0: i32) -> (i32, i32) {
    %c0_i32 = arith.constant 0 : i32
    %c0_i32_0 = arith.constant 0 : i32
    %c0_i32_1 = arith.constant 0 : i32
    return %c0_i32, %c0_i32_0 : i32, i32
  }
  func.func @transform_3(%arg0: i32) -> (i32, i32) {
    %c0_i32 = arith.constant 0 : i32
    %c0_i32_0 = arith.constant 0 : i32
    %c0_i32_1 = arith.constant 0 : i32
    return %c0_i32, %c0_i32_0 : i32, i32
  }
}

module attributes {stable_mosaic.version = 11 : i64} {
  func.func @_apply_mlp_kernel(%arg0: i32, %arg1: i32, %arg2: memref<16x128xf32, #tpu.memory_space<vmem>>, %arg3: memref<1x128xf32, #tpu.memory_space<vmem>>, %arg4: memref<1x128xf32, #tpu.memory_space<vmem>>, %arg5: memref<1x128xf32, #tpu.memory_space<vmem>>, %arg6: memref<1x128xf32, #tpu.memory_space<vmem>>, %arg7: memref<128x256xbf16, #tpu.memory_space<vmem>>, %arg8: memref<128x256xbf16, #tpu.memory_space<vmem>>, %arg9: memref<256x128xbf16, #tpu.memory_space<vmem>>, %arg10: memref<16x128xf32, #tpu.memory_space<vmem>>, %arg11: memref<16x128xf32, #tpu.memory_space<vmem>>, %arg12: memref<16x128xf32, #tpu.memory_space<vmem>>, %arg13: memref<16x128xbf16, #tpu.memory_space<vmem>>) attributes {dimension_semantics = [#tpu.dimension_semantics<parallel>, #tpu.dimension_semantics<arbitrary>], iteration_bounds = array<i64: 2, 2>, scalar_prefetch = 0 : i64, scratch_operands = 3 : i64, tpu.core_type = #tpu.core_type<tc>, window_params = [{transform_indices = @transform_0, window_bounds = array<i64: 16, 128>}, {pipeline_mode = #tpu.pipeline_mode<synchronous>, transform_indices = @transform_1, window_bounds = array<i64: 1, 128>}, {pipeline_mode = #tpu.pipeline_mode<synchronous>, transform_indices = @transform_2, window_bounds = array<i64: 1, 128>}, {pipeline_mode = #tpu.pipeline_mode<synchronous>, transform_indices = @transform_3, window_bounds = array<i64: 1, 128>}, {pipeline_mode = #tpu.pipeline_mode<synchronous>, transform_indices = @transform_4, window_bounds = array<i64: 1, 128>}, {transform_indices = @transform_5, window_bounds = array<i64: 128, 256>}, {transform_indices = @transform_6, window_bounds = array<i64: 128, 256>}, {transform_indices = @transform_7, window_bounds = array<i64: 256, 128>}, {transform_indices = @transform_8, window_bounds = array<i64: 16, 128>}]} {
    %c0_i32 = arith.constant 0 : i32
    %0 = arith.cmpi eq, %arg1, %c0_i32 : i32
    %1 = arith.extui %0 : i1 to i32
    %c0_i32_0 = arith.constant 0 : i32
    %2 = arith.cmpi ne, %1, %c0_i32_0 : i32
    scf.if %2 {
      %c0_16 = arith.constant 0 : index
      %c0_17 = arith.constant 0 : index
      %24 = vector.load %arg2[%c0_16, %c0_17] : memref<16x128xf32, #tpu.memory_space<vmem>>, vector<16x128xf32>
      %c0_18 = arith.constant 0 : index
      %c0_19 = arith.constant 0 : index
      %25 = vector.load %arg3[%c0_18, %c0_19] : memref<1x128xf32, #tpu.memory_space<vmem>>, vector<1x128xf32>
      %26 = arith.mulf %24, %24 : vector<16x128xf32>
      %cst_20 = arith.constant dense<0.000000e+00> : vector<16xf32>
      %27 = vector.multi_reduction <add>, %26, %cst_20 [1] : vector<16x128xf32> to vector<16xf32>
      %28 = vector.shape_cast %27 : vector<16xf32> to vector<16x1xf32>
      %cst_21 = arith.constant 1.280000e+02 : f32
      %29 = vector.broadcast %cst_21 : f32 to vector<16x1xf32>
      %30 = arith.divf %28, %29 : vector<16x1xf32>
      %cst_22 = arith.constant 9.99999997E-7 : f32
      %31 = vector.broadcast %cst_22 : f32 to vector<16x1xf32>
      %32 = arith.addf %30, %31 : vector<16x1xf32>
      %33 = math.rsqrt %32 : vector<16x1xf32>
      %34 = vector.broadcast %33 : vector<16x1xf32> to vector<16x128xf32>
      %35 = arith.mulf %24, %34 : vector<16x128xf32>
      %36 = vector.broadcast %25 : vector<1x128xf32> to vector<16x128xf32>
      %37 = arith.mulf %35, %36 : vector<16x128xf32>
      %c0_23 = arith.constant 0 : index
      %c0_24 = arith.constant 0 : index
      %38 = vector.load %arg5[%c0_23, %c0_24] : memref<1x128xf32, #tpu.memory_space<vmem>>, vector<1x128xf32>
      %39 = vector.broadcast %38 : vector<1x128xf32> to vector<16x128xf32>
      %40 = arith.subf %37, %39 : vector<16x128xf32>
      %c0_25 = arith.constant 0 : index
      %c0_26 = arith.constant 0 : index
      %41 = vector.load %arg6[%c0_25, %c0_26] : memref<1x128xf32, #tpu.memory_space<vmem>>, vector<1x128xf32>
      %42 = vector.broadcast %41 : vector<1x128xf32> to vector<16x128xf32>
      %43 = arith.mulf %40, %42 : vector<16x128xf32>
      %44 = math.roundeven %43 : vector<16x128xf32>
      %45 = arith.addf %24, %44 : vector<16x128xf32>
      %c0_27 = arith.constant 0 : index
      %c0_28 = arith.constant 0 : index
      %46 = vector.load %arg12[%c0_27, %c0_28] : memref<16x128xf32, #tpu.memory_space<vmem>>, vector<16x128xf32>
      tpu.vector_store %arg12[%c0_27, %c0_28], %45 {strides = array<i32>} : memref<16x128xf32, #tpu.memory_space<vmem>>, vector<16x128xf32>,
      %c0_29 = arith.constant 0 : index
      %c0_30 = arith.constant 0 : index
      %47 = vector.load %arg4[%c0_29, %c0_30] : memref<1x128xf32, #tpu.memory_space<vmem>>, vector<1x128xf32>
      %48 = arith.mulf %45, %45 : vector<16x128xf32>
      %cst_31 = arith.constant dense<0.000000e+00> : vector<16xf32>
      %49 = vector.multi_reduction <add>, %48, %cst_31 [1] : vector<16x128xf32> to vector<16xf32>
      %50 = vector.shape_cast %49 : vector<16xf32> to vector<16x1xf32>
      %cst_32 = arith.constant 1.280000e+02 : f32
      %51 = vector.broadcast %cst_32 : f32 to vector<16x1xf32>
      %52 = arith.divf %50, %51 : vector<16x1xf32>
      %cst_33 = arith.constant 9.99999997E-7 : f32
      %53 = vector.broadcast %cst_33 : f32 to vector<16x1xf32>
      %54 = arith.addf %52, %53 : vector<16x1xf32>
      %55 = math.rsqrt %54 : vector<16x1xf32>
      %56 = vector.broadcast %55 : vector<16x1xf32> to vector<16x128xf32>
      %57 = arith.mulf %45, %56 : vector<16x128xf32>
      %58 = vector.broadcast %47 : vector<1x128xf32> to vector<16x128xf32>
      %59 = arith.mulf %57, %58 : vector<16x128xf32>
      %60 = arith.truncf %59 : vector<16x128xf32> to vector<16x128xbf16>
      %c0_34 = arith.constant 0 : index
      %c0_35 = arith.constant 0 : index
      %61 = vector.load %arg13[%c0_34, %c0_35] : memref<16x128xbf16, #tpu.memory_space<vmem>>, vector<16x128xbf16>
      tpu.vector_store %arg13[%c0_34, %c0_35], %60 {strides = array<i32>} : memref<16x128xbf16, #tpu.memory_space<vmem>>, vector<16x128xbf16>,
      %cst_36 = arith.constant 0.000000e+00 : f32
      %62 = vector.broadcast %cst_36 : f32 to vector<16x128xf32>
      %c0_37 = arith.constant 0 : index
      %c0_38 = arith.constant 0 : index
      %63 = vector.load %arg11[%c0_37, %c0_38] : memref<16x128xf32, #tpu.memory_space<vmem>>, vector<16x128xf32>
      tpu.vector_store %arg11[%c0_37, %c0_38], %62 {strides = array<i32>} : memref<16x128xf32, #tpu.memory_space<vmem>>, vector<16x128xf32>,
    } else {
    }
    %c0 = arith.constant 0 : index
    %c0_1 = arith.constant 0 : index
    %3 = vector.load %arg13[%c0, %c0_1] : memref<16x128xbf16, #tpu.memory_space<vmem>>, vector<16x128xbf16>
    %c0_2 = arith.constant 0 : index
    %c0_3 = arith.constant 0 : index
    %4 = vector.load %arg7[%c0_2, %c0_3] : memref<128x256xbf16, #tpu.memory_space<vmem>>, vector<128x256xbf16>
    %cst = arith.constant dense<0.000000e+00> : vector<16x256xf32>
    %5 = tpu.matmul %3, %4, %cst {dimension_numbers = #tpu.dot_dimension_numbers<[1], [0], [0], [1], [0, 0, 1, 1], [], []>} : vector<16x128xbf16>, vector<128x256xbf16>, vector<16x256xf32> -> vector<16x256xf32>
    %c0_4 = arith.constant 0 : index
    %c0_5 = arith.constant 0 : index
    %6 = vector.load %arg8[%c0_4, %c0_5] : memref<128x256xbf16, #tpu.memory_space<vmem>>, vector<128x256xbf16>
    %cst_6 = arith.constant dense<0.000000e+00> : vector<16x256xf32>
    %7 = tpu.matmul %3, %6, %cst_6 {dimension_numbers = #tpu.dot_dimension_numbers<[1], [0], [0], [1], [0, 0, 1, 1], [], []>} : vector<16x128xbf16>, vector<128x256xbf16>, vector<16x256xf32> -> vector<16x256xf32>
    %8 = arith.negf %5 : vector<16x256xf32>
    %9 = math.exp %8 : vector<16x256xf32>
    %cst_7 = arith.constant 1.000000e+00 : f32
    %10 = vector.broadcast %cst_7 : f32 to vector<16x256xf32>
    %11 = arith.addf %10, %9 : vector<16x256xf32>
    %12 = arith.divf %10, %11 : vector<16x256xf32>
    %13 = arith.mulf %5, %12 : vector<16x256xf32>
    %c0_8 = arith.constant 0 : index
    %c0_9 = arith.constant 0 : index
    %14 = vector.load %arg11[%c0_8, %c0_9] : memref<16x128xf32, #tpu.memory_space<vmem>>, vector<16x128xf32>
    %15 = arith.mulf %13, %7 : vector<16x256xf32>
    %16 = arith.truncf %15 : vector<16x256xf32> to vector<16x256xbf16>
    %c0_10 = arith.constant 0 : index
    %c0_11 = arith.constant 0 : index
    %17 = vector.load %arg9[%c0_10, %c0_11] : memref<256x128xbf16, #tpu.memory_space<vmem>>, vector<256x128xbf16>
    %cst_12 = arith.constant dense<0.000000e+00> : vector<16x128xf32>
    %18 = tpu.matmul %16, %17, %cst_12 {dimension_numbers = #tpu.dot_dimension_numbers<[1], [0], [0], [1], [0, 0, 1, 1], [], []>} : vector<16x256xbf16>, vector<256x128xbf16>, vector<16x128xf32> -> vector<16x128xf32>
    %19 = arith.addf %14, %18 : vector<16x128xf32>
    %c0_13 = arith.constant 0 : index
    %c0_14 = arith.constant 0 : index
    %20 = vector.load %arg11[%c0_13, %c0_14] : memref<16x128xf32, #tpu.memory_space<vmem>>, vector<16x128xf32>
    tpu.vector_store %arg11[%c0_13, %c0_14], %19 {strides = array<i32>} : memref<16x128xf32, #tpu.memory_space<vmem>>, vector<16x128xf32>,
    %c1_i32 = arith.constant 1 : i32
    %21 = arith.cmpi eq, %arg1, %c1_i32 : i32
    %22 = arith.extui %21 : i1 to i32
    %c0_i32_15 = arith.constant 0 : i32
    %23 = arith.cmpi ne, %22, %c0_i32_15 : i32
    scf.if %23 {
      %c0_16 = arith.constant 0 : index
      %c0_17 = arith.constant 0 : index
      %24 = vector.load %arg12[%c0_16, %c0_17] : memref<16x128xf32, #tpu.memory_space<vmem>>, vector<16x128xf32>
      %c0_18 = arith.constant 0 : index
      %c0_19 = arith.constant 0 : index
      %25 = vector.load %arg11[%c0_18, %c0_19] : memref<16x128xf32, #tpu.memory_space<vmem>>, vector<16x128xf32>
      %26 = arith.addf %24, %25 : vector<16x128xf32>
      %c0_20 = arith.constant 0 : index
      %c0_21 = arith.constant 0 : index
      %27 = vector.load %arg10[%c0_20, %c0_21] : memref<16x128xf32, #tpu.memory_space<vmem>>, vector<16x128xf32>
      tpu.vector_store %arg10[%c0_20, %c0_21], %26 {strides = array<i32>} : memref<16x128xf32, #tpu.memory_space<vmem>>, vector<16x128xf32>,
    } else {
    }
    return
  }
  func.func @transform_0(%arg0: i32, %arg1: i32) -> (i32, i32) {
    %c0_i32 = arith.constant 0 : i32
    %c0_i32_0 = arith.constant 0 : i32
    return %arg0, %c0_i32 : i32, i32
  }
  func.func @transform_1(%arg0: i32, %arg1: i32) -> (i32, i32) {
    %c0_i32 = arith.constant 0 : i32
    %c0_i32_0 = arith.constant 0 : i32
    %c0_i32_1 = arith.constant 0 : i32
    return %c0_i32, %c0_i32_0 : i32, i32
  }
  func.func @transform_2(%arg0: i32, %arg1: i32) -> (i32, i32) {
    %c0_i32 = arith.constant 0 : i32
    %c0_i32_0 = arith.constant 0 : i32
    %c0_i32_1 = arith.constant 0 : i32
    return %c0_i32, %c0_i32_0 : i32, i32
  }
  func.func @transform_3(%arg0: i32, %arg1: i32) -> (i32, i32) {
    %c0_i32 = arith.constant 0 : i32
    %c0_i32_0 = arith.constant 0 : i32
    %c0_i32_1 = arith.constant 0 : i32
    return %c0_i32, %c0_i32_0 : i32, i32
  }
  func.func @transform_4(%arg0: i32, %arg1: i32) -> (i32, i32) {
    %c0_i32 = arith.constant 0 : i32
    %c0_i32_0 = arith.constant 0 : i32
    %c0_i32_1 = arith.constant 0 : i32
    return %c0_i32, %c0_i32_0 : i32, i32
  }
  func.func @transform_5(%arg0: i32, %arg1: i32) -> (i32, i32) {
    %c0_i32 = arith.constant 0 : i32
    %c0_i32_0 = arith.constant 0 : i32
    return %c0_i32, %arg1 : i32, i32
  }
  func.func @transform_6(%arg0: i32, %arg1: i32) -> (i32, i32) {
    %c0_i32 = arith.constant 0 : i32
    %c0_i32_0 = arith.constant 0 : i32
    return %c0_i32, %arg1 : i32, i32
  }
  func.func @transform_7(%arg0: i32, %arg1: i32) -> (i32, i32) {
    %c0_i32 = arith.constant 0 : i32
    %c0_i32_0 = arith.constant 0 : i32
    return %arg1, %c0_i32 : i32, i32
  }
  func.func @transform_8(%arg0: i32, %arg1: i32) -> (i32, i32) {
    %c0_i32 = arith.constant 0 : i32
    %c0_i32_0 = arith.constant 0 : i32
    return %arg0, %c0_i32 : i32, i32
  }
}

</mosaic_0001>

<llo_original>
// kernel: decoder_layer.2
$region0: #{decoder_layer.2}
  #allocation0 [shape = 'u32[]', space=smem, size = 0x4, offset = 0x4, fixed_abs, tag = 'smem constant byte address 0x4 - core index']
  #allocation1 [shape = 'u32[144,128]{1,0:T(1,128)}', space=vmem, size = 0x12000, scoped, tag = 'internal scratch']
  %s0 = inlined_call_operand.hbm [shape: f32[32,128], index: 0, kind: input, shape index: {}]
  %s1 = inlined_call_operand.hbm [shape: f32[1,128], index: 1, kind: input, shape index: {}]
  %s2 = inlined_call_operand.vmem [shape: f32[1,128], index: 2, kind: output, shape index: {0}]
  %s3 = inlined_call_operand.vmem [shape: f32[1,128], index: 3, kind: output, shape index: {1}]
  %4 = xla_tuple %s2, %s3
  %s5 = sld [smem:[#allocation0]]
  $region61: #{decoder_layer.2} parent=0
    _
  %s7 = ssub.s32 1, %s5
  %s8 = scalar_select 0, %s7, %s5
  $region1: #{decoder_layer.2} parent=0
    #allocation2 [shape = 'u8[16384]{0}', space=vmem, size = 0x4000, scoped, tag = 'input window, operand 0']
    #allocation3 [shape = 's32[2]{0}', space=sflag, size = 0x8, scoped, tag = 'scoped memory for decoder_layer.2']
    #allocation4 [shape = 'u8[512]{0}', space=vmem, size = 0x400, scoped, tag = 'input window, operand 1, single buffered']
    #allocation5 [shape = 's32[1]{0}', space=sflag, size = 0x4, scoped, tag = 'scoped memory for decoder_layer.2']
    %9 = vsyncpa [#allocation3], 0
    %s10 = scalar_lea.sflag [#allocation3], 1
    %11 = vsyncpa %s10, 0
    %12 = vsyncpa [#allocation5], 0
    loop: start=0, step=1, limit=4
    $region2: #{decoder_layer.2} parent=1 // loop_pre_header
      _
    $region3: #{decoder_layer.2} parent=1 // loop_header
      %s14 = sphi 0, %s18
      %p15 = scmp.ge.s32.totalorder %s14, 4
      %s24 = sphi 0, %s26
      %s27 = sphi 0, %s24
      %s28 = sphi 0, %s27
      %s44 = sphi 0, %s28
      %s48 = sphi 0, %s48
      %s50 = sphi 0, %s48
      %s51 = sphi 0, %s50
      %s65 = sphi 0, %s51
      %s69 = sphi 0, %s69
      %s71 = sphi 0, %s69
      %s72 = sphi 0, %s71
      %s86 = sphi 0, %s72
      %s90 = sphi 0, %s90
      %s92 = sphi 0, %s90
      %s93 = sphi 0, %s92
      %s107 = sphi 0, %s93
    $region4: #{decoder_layer.2} parent=1 // loop_header_branch
      %17 = sbr.rel (%p15) target = $region8
    $region5: #{decoder_layer.2} parent=1 // loop_body
      %s19 = ssub.s32 %s14, 1
      %s20 = ssub.s32 %s14, 2
      %s21 = sadd.s32 %s14, 1
      %s22 = ssub.s32 %s14, %s21
      %p23 = scmp.eq.s32.totalorder %s22, 0
      %s25 = sadd.s32 %s24, 1
      %s26 = scalar_select %p23, %s24, %s25
      %p29 = pneg %p23
      %p30 = scmp.eq.s32.totalorder %s14, 1
      %p31 = por %p29, %p30
      %p32 = scmp.ne.s32.totalorder %s24, %s27
      %p33 = scmp.eq.s32.totalorder %s14, 0
      %p34 = por %p32, %p33
      %p35 = scmp.ne.s32.totalorder %s24, %s27
      %p36 = scmp.eq.s32.totalorder %s19, 1
      %p37 = por %p35, %p36
      %p38 = scmp.ne.s32.totalorder %s27, %s28
      %p39 = scmp.eq.s32.totalorder %s19, 0
      %p40 = por %p38, %p39
      %p41 = scmp.ne.s32.totalorder %s27, %s28
      %p42 = scmp.eq.s32.totalorder %s20, 1
      %p43 = por %p41, %p42
      %p45 = scmp.ne.s32.totalorder %s28, %s44
      %p46 = scmp.eq.s32.totalorder %s20, 0
      %p47 = por %p45, %p46
      %s49 = sadd.s32 %s48, 1
      %p52 = scmp.eq.s32.totalorder %s14, 1
      %p53 = scmp.ne.s32.totalorder %s48, %s50
      %p54 = scmp.eq.s32.totalorder %s14, 0
      %p55 = por %p53, %p54
      %p56 = scmp.ne.s32.totalorder %s48, %s50
      %p57 = scmp.eq.s32.totalorder %s19, 1
      %p58 = por %p56, %p57
      %p59 = scmp.ne.s32.totalorder %s50, %s51
      %p60 = scmp.eq.s32.totalorder %s19, 0
      %p61 = por %p59, %p60
      %p62 = scmp.ne.s32.totalorder %s50, %s51
      %p63 = scmp.eq.s32.totalorder %s20, 1
      %p64 = por %p62, %p63
      %p66 = scmp.ne.s32.totalorder %s51, %s65
      %p67 = scmp.eq.s32.totalorder %s20, 0
      %p68 = por %p66, %p67
      %s70 = sadd.s32 %s69, 1
      %p73 = scmp.eq.s32.totalorder %s14, 1
      %p74 = scmp.ne.s32.totalorder %s69, %s71
      %p75 = scmp.eq.s32.totalorder %s14, 0
      %p76 = por %p74, %p75
      %p77 = scmp.ne.s32.totalorder %s69, %s71
      %p78 = scmp.eq.s32.totalorder %s19, 1
      %p79 = por %p77, %p78
      %p80 = scmp.ne.s32.totalorder %s71, %s72
      %p81 = scmp.eq.s32.totalorder %s19, 0
      %p82 = por %p80, %p81
      %p83 = scmp.ne.s32.totalorder %s71, %s72
      %p84 = scmp.eq.s32.totalorder %s20, 1
      %p85 = por %p83, %p84
      %p87 = scmp.ne.s32.totalorder %s72, %s86
      %p88 = scmp.eq.s32.totalorder %s20, 0
      %p89 = por %p87, %p88
      %s91 = sadd.s32 %s90, 1
      %p94 = scmp.eq.s32.totalorder %s14, 1
      %p95 = scmp.ne.s32.totalorder %s90, %s92
      %p96 = scmp.eq.s32.totalorder %s14, 0
      %p97 = por %p95, %p96
      %p98 = scmp.ne.s32.totalorder %s90, %s92
      %p99 = scmp.eq.s32.totalorder %s19, 1
      %p100 = por %p98, %p99
      %p101 = scmp.ne.s32.totalorder %s92, %s93
      %p102 = scmp.eq.s32.totalorder %s19, 0
      %p103 = por %p101, %p102
      %p104 = scmp.ne.s32.totalorder %s92, %s93
      %p105 = scmp.eq.s32.totalorder %s20, 1
      %p106 = por %p104, %p105
      %p108 = scmp.ne.s32.totalorder %s93, %s107
      %p109 = scmp.eq.s32.totalorder %s20, 0
      %p110 = por %p108, %p109
      %p111 = scmp.le.s32.totalorder 1, %s14
      %p112 = scmp.lt.s32.totalorder %s14, 3
      %p113 = pnand %p111, %p112
      %p114 = pneg %p113
      // Predicated region
      $region9: #{decoder_layer.2} parent=5 // pred_check
        _
      $region10: #{decoder_layer.2} parent=5 // pred_check_branch
        %116 = sbr.rel (%p113) target = $region12
      $region11: #{decoder_layer.2} parent=5 // pred_region
        %s117 = ssub.s32 %s14, 1
        // Predicated region
        $region13: #{decoder_layer.2} parent=11 // pred_check
          %p118 = pneg %p61
        $region14: #{decoder_layer.2} parent=11 // pred_check_branch
          %120 = sbr.rel (%p118) target = $region16
        $region15: #{decoder_layer.2} parent=11 // pred_region
          %s122 = ssub.s32 16, 16
          %123 = vsyncadd [#allocation5], %s122
          %s125 = sshll.u32 [#allocation4], 4
          %s126 = int_to_ptr.vmem [resolvable:$true] %s125
          %128 = dma.hbm_to_vmem [thread:$0]  %s1, 16, %s126, [#allocation5]
        $region16: #{decoder_layer.2} parent=11 // pred_fallthru
          _
      $region12: #{decoder_layer.2} parent=5 // pred_fallthru
        _
      %p129 = scmp.lt.s32.totalorder %s14, 2
      // Predicated region
      $region17: #{decoder_layer.2} parent=5 // pred_check
        %p130 = pneg %p129
      $region18: #{decoder_layer.2} parent=5 // pred_check_branch
        %132 = sbr.rel (%p130) target = $region20
      $region19: #{decoder_layer.2} parent=5 // pred_region
        // Predicated region
        $region21: #{decoder_layer.2} parent=19 // pred_check
          %p133 = pneg %p34
        $region22: #{decoder_layer.2} parent=19 // pred_check_branch
          %135 = sbr.rel (%p133) target = $region24
        $region23: #{decoder_layer.2} parent=19 // pred_region
          %s136 = sand.u32 %s24, 1
          %s137 = scalar_lea.sflag [#allocation3], %s136
          %s138 = sand.u32 %s24, 1
          %s139 = smul.addr %s138, 16
          %s140 = scalar_lea.vmem [#allocation2], %s139
          %s141 = smul.u32 2, %s14
          %s143 = ssub.s32 256, 256
          %144 = vsyncadd %s137, %s143
          %s145 = smul.addr %s141, 128
          %s146 = scalar_lea.hbm %s0, %s145
          %s147 = sshll.u32 %s140, 4
          %s148 = int_to_ptr.vmem [resolvable:$true] %s147
          %153 = dma.hbm_to_vmem [thread:$0]  %s146, 256, %s148, %s137, 128, 128, 8
        $region24: #{decoder_layer.2} parent=19 // pred_fallthru
          _
      $region20: #{decoder_layer.2} parent=5 // pred_fallthru
        _
      %p154 = scmp.le.s32.totalorder 1, %s14
      %p155 = scmp.lt.s32.totalorder %s14, 3
      %p156 = pnand %p154, %p155
      %p157 = pneg %p156
      // Predicated region
      $region25: #{decoder_layer.2} parent=5 // pred_check
        _
      $region26: #{decoder_layer.2} parent=5 // pred_check_branch
        %159 = sbr.rel (%p156) target = $region28
      $region27: #{decoder_layer.2} parent=5 // pred_region
        %s160 = ssub.s32 %s14, 1
        %s161 = sand.u32 %s27, 1
        %s162 = scalar_lea.sflag [#allocation3], %s161
        %s163 = sand.u32 %s27, 1
        %s164 = smul.addr %s163, 16
        %s165 = scalar_lea.vmem [#allocation2], %s164
        // Predicated region
        $region29: #{decoder_layer.2} parent=27 // pred_check
          %p166 = pneg %p40
        $region30: #{decoder_layer.2} parent=27 // pred_check_branch
          %168 = sbr.rel (%p166) target = $region32
        $region31: #{decoder_layer.2} parent=27 // pred_region
          %169 = dma.done %s162, 256
        $region32: #{decoder_layer.2} parent=27 // pred_fallthru
          _
        // Predicated region
        $region33: #{decoder_layer.2} parent=27 // pred_check
          %p170 = pneg %p61
        $region34: #{decoder_layer.2} parent=27 // pred_check_branch
          %172 = sbr.rel (%p170) target = $region36
        $region35: #{decoder_layer.2} parent=27 // pred_region
          %173 = dma.done [#allocation5], 16
        $region36: #{decoder_layer.2} parent=27 // pred_fallthru
          _
        %s174 = sand.u32 %s27, 1
        %s175 = scalar_lea.sflag [#allocation3], %s174
        %s176 = sand.u32 %s27, 1
        %s177 = smul.addr %s176, 16
        %s178 = scalar_lea.vmem [#allocation2], %s177
        %p179 = pneg %p40
        %p180 = pneg %p37
        %p181 = pneg %p61
        %p182 = pneg %p58
        %p183 = pneg %p82
        %p184 = pneg %p79
        %p185 = pneg %p103
        %p186 = pneg %p100
        %s187 = smul.u32 2, %s19
        %p188 = scmp.eq.s32.totalorder %s19, 0
        // Predicated region
        $region37: #{decoder_layer.2} parent=27 // pred_check
          %p189 = pneg %p188
        $region38: #{decoder_layer.2} parent=27 // pred_check_branch
          %191 = sbr.rel (%p189) target = $region40
        $region39: #{decoder_layer.2} parent=27 // pred_region
          %192 = vst [vmem:[%s2] sm:$0x1] inf
          %193 = vst [vmem:[%s3] sm:$0x1] -inf
        $region40: #{decoder_layer.2} parent=27 // pred_fallthru
          _
        %v194 = vld [vmem:[%s165] sm:$0xff]
        %v195 = vld [vmem:[%s165 + $0x8] sm:$0xff]
        %v196 = vld [vmem:[#allocation4] sm:$0x1]
        %v197 = vmul.f32 %v194, %v194
        %v198 = vmul.f32 %v195, %v195
        %199 = vadd.xlane.f32.xlu0 %v197
        %v200 = vpop.xlane.xlu0 %199
        %201 = vadd.xlane.f32.xlu0 %v198
        %v202 = vpop.xlane.xlu0 %201
        %v203 = vrcp.pop 128.0
        %v204 = vmul.f32 %v200, %v203
        %v205 = vmul.f32 %v202, %v203
        %v206 = vadd.f32 %v204, 1e-06
        %v207 = vadd.f32 %v205, 1e-06
        %v208 = vrsqrt.pop %v206
        %v209 = vrsqrt.pop %v207
        %v210 = vmul.f32 %v194, %v208
        %v211 = vmul.f32 %v195, %v209
        %v213 = vlaneseq
        %v214 = vshrl.u32 %v213, 7
        %v215 = vsub.s32 0, %v214
        %v216 = vrot.slane %v196, %v215
        %v218 = vmul.f32 %v210, %v216
        %v219 = vmul.f32 %v211, %v216
        %v220 = vld [vmem:[%s2] sm:$0x1]
        %v221 = vmin.f32 %v218, %v219
        %v222 = vrot.slane %v221, 4
        %v223 = vmin.f32 %v221, %v222
        %v224 = vrot.slane %v223, 2
        %v225 = vmin.f32 %v223, %v224
        %v226 = vrot.slane %v225, 1
        %v227 = vmin.f32 %v225, %v226
        %v228 = vmin.f32 %v220, %v227
        %229 = vst [vmem:[%s2] sm:$0x1] %v228
        %v230 = vld [vmem:[%s3] sm:$0x1]
        %v231 = vmax.f32 %v218, %v219
        %v232 = vrot.slane %v231, 4
        %v233 = vmax.f32 %v231, %v232
        %v234 = vrot.slane %v233, 2
        %v235 = vmax.f32 %v233, %v234
        %v236 = vrot.slane %v235, 1
        %v237 = vmax.f32 %v235, %v236
        %v238 = vmax.f32 %v230, %v237
        %239 = vst [vmem:[%s3] sm:$0x1] %v238
        // Predicated region
        $region41: #{decoder_layer.2} parent=27 // pred_check
          %p240 = pneg %p79
        $region42: #{decoder_layer.2} parent=27 // pred_check_branch
          %242 = sbr.rel (%p240) target = $region44
        $region43: #{decoder_layer.2} parent=27 // pred_region
          _
        $region44: #{decoder_layer.2} parent=27 // pred_fallthru
          _
        // Predicated region
        $region45: #{decoder_layer.2} parent=27 // pred_check
          %p243 = pneg %p100
        $region46: #{decoder_layer.2} parent=27 // pred_check_branch
          %245 = sbr.rel (%p243) target = $region48
        $region47: #{decoder_layer.2} parent=27 // pred_region
          _
        $region48: #{decoder_layer.2} parent=27 // pred_fallthru
          _
        // Predicated region
        $region49: #{decoder_layer.2} parent=27 // pred_check
          %p246 = pneg %p79
        $region50: #{decoder_layer.2} parent=27 // pred_check_branch
          %248 = sbr.rel (%p246) target = $region52
        $region51: #{decoder_layer.2} parent=27 // pred_region
          _
        $region52: #{decoder_layer.2} parent=27 // pred_fallthru
          _
        // Predicated region
        $region53: #{decoder_layer.2} parent=27 // pred_check
          %p249 = pneg %p100
        $region54: #{decoder_layer.2} parent=27 // pred_check_branch
          %251 = sbr.rel (%p249) target = $region56
        $region55: #{decoder_layer.2} parent=27 // pred_region
          _
        $region56: #{decoder_layer.2} parent=27 // pred_fallthru
          _
      $region28: #{decoder_layer.2} parent=5 // pred_fallthru
        _
      %p252 = scmp.le.s32.totalorder 2, %s14
      // Predicated region
      $region57: #{decoder_layer.2} parent=5 // pred_check
        %p253 = pneg %p252
      $region58: #{decoder_layer.2} parent=5 // pred_check_branch
        %255 = sbr.rel (%p253) target = $region60
      $region59: #{decoder_layer.2} parent=5 // pred_region
        %s256 = ssub.s32 %s14, 2
      $region60: #{decoder_layer.2} parent=5 // pred_fallthru
        _
    $region6: #{decoder_layer.2} parent=1 // loop_footer
      %s18 = sadd.s32 1, %s14
    $region7: #{decoder_layer.2} parent=1 // loop_footer_branch
      %13 = sbr.rel target = $region3
    $region8: #{decoder_layer.2} parent=1 // loop_exit
      _
    %257 = vsyncpa [#allocation3], 1
    %s258 = scalar_lea.sflag [#allocation3], 1
    %259 = vsyncpa %s258, 1
    %260 = vsyncpa [#allocation5], 1

// kernel: decoder_layer.3
$region0: #{decoder_layer.3}
  #allocation0 [shape = 'u32[]', space=smem, size = 0x4, offset = 0x4, fixed_abs, tag = 'smem constant byte address 0x4 - core index']
  #allocation1 [shape = 'u32[144,128]{1,0:T(1,128)}', space=vmem, size = 0x12000, scoped, tag = 'internal scratch']
  #allocation2 [shape = 'f32[16,128]{1,0:T(8,128)}', space=vmem, size = 0x2000, scoped, tag = 'scratch operand']
  #allocation3 [shape = 'f32[16,128]{1,0:T(8,128)}', space=vmem, size = 0x2000, scoped, tag = 'scratch operand']
  #allocation4 [shape = 'bf16[16,128]{1,0:T(16,128)(2,1)}', space=vmem, size = 0x1000, scoped, tag = 'scratch operand']
  %s0 = inlined_call_operand.vmem [shape: f32[32,128], index: 0, kind: input, shape index: {}]
  %s1 = inlined_call_operand.vmem [shape: f32[1,128], index: 1, kind: input, shape index: {}]
  %s2 = inlined_call_operand.vmem [shape: f32[1,128], index: 2, kind: input, shape index: {}]
  %s3 = inlined_call_operand.vmem [shape: f32[1,128], index: 3, kind: input, shape index: {}]
  %s4 = inlined_call_operand.vmem [shape: f32[1,128], index: 4, kind: input, shape index: {}]
  %s5 = inlined_call_operand.vmem [shape: bf16[128,512], index: 5, kind: input, shape index: {}]
  %s6 = inlined_call_operand.vmem [shape: bf16[128,512], index: 6, kind: input, shape index: {}]
  %s7 = inlined_call_operand.vmem [shape: bf16[512,128], index: 7, kind: input, shape index: {}]
  %s8 = inlined_call_operand.hbm [shape: f32[32,128], index: 8, kind: output, shape index: {}]
  %s9 = sld [smem:[#allocation0]]
  $region149: #{decoder_layer.3} parent=0
    _
  %s11 = ssub.s32 1, %s9
  %s12 = scalar_select 0, %s11, %s9
  $region1: #{decoder_layer.3} parent=0
    #allocation5 [shape = 'u8[131072]{0}', space=vmem, size = 0x20000, scoped, tag = 'input window, operand 5']
    #allocation6 [shape = 'u8[131072]{0}', space=vmem, size = 0x20000, scoped, tag = 'input window, operand 6']
    #allocation7 [shape = 'u8[16384]{0}', space=vmem, size = 0x4000, scoped, tag = 'output window, operand 0']
    #allocation8 [shape = 's32[2]{0}', space=sflag, size = 0x8, scoped, tag = 'scoped memory for decoder_layer.3']
    %13 = vsyncpa [#allocation8], 0
    %s14 = scalar_lea.sflag [#allocation8], 1
    %15 = vsyncpa %s14, 0
    loop: start=0, step=1, limit=6
    $region2: #{decoder_layer.3} parent=1 // loop_pre_header
      _
    $region3: #{decoder_layer.3} parent=1 // loop_header
      %s17 = sphi 0, %s21
      %p18 = scmp.ge.s32.totalorder %s17, 6
      %s24 = sphi 0, %s36
      %s25 = sphi 0, %s32
      %s26 = sphi 0, %s24
      %s27 = sphi 0, %s25
      %s28 = sphi 0, %s26
      %s29 = sphi 0, %s27
      %s39 = sphi 0, %s41
      %s42 = sphi 0, %s39
      %s43 = sphi 0, %s42
      %s59 = sphi 0, %s43
      %s63 = sphi 0, %s63
      %s65 = sphi 0, %s63
      %s66 = sphi 0, %s65
      %s80 = sphi 0, %s66
      %s84 = sphi 0, %s84
      %s86 = sphi 0, %s84
      %s87 = sphi 0, %s86
      %s101 = sphi 0, %s87
      %s105 = sphi 0, %s105
      %s107 = sphi 0, %s105
      %s108 = sphi 0, %s107
      %s122 = sphi 0, %s108
      %s126 = sphi 0, %s126
      %s128 = sphi 0, %s126
      %s129 = sphi 0, %s128
      %s143 = sphi 0, %s129
      %s149 = sphi 0, %s151
      %s152 = sphi 0, %s149
      %s153 = sphi 0, %s152
      %s169 = sphi 0, %s153
      %s175 = sphi 0, %s177
      %s178 = sphi 0, %s175
      %s179 = sphi 0, %s178
      %s195 = sphi 0, %s179
      %s201 = sphi 0, %s203
      %s204 = sphi 0, %s201
      %s205 = sphi 0, %s204
      %s221 = sphi 0, %s205
      %s227 = sphi 0, %s229
      %s230 = sphi 0, %s227
      %s231 = sphi 0, %s230
      %s247 = sphi 0, %s231
    $region4: #{decoder_layer.3} parent=1 // loop_header_branch
      %20 = sbr.rel (%p18) target = $region8
    $region5: #{decoder_layer.3} parent=1 // loop_body
      %s22 = ssub.s32 %s17, 1
      %s23 = ssub.s32 %s17, 2
      %s30 = sadd.s32 1, %s25
      %p31 = scmp.ge.s32.totalorder %s30, 2
      %s32 = scalar_select %p31, 0, %s30
      %s33 = sadd.s32 1, %s24
      %s34 = scalar_select %p31, %s33, %s24
      %p35 = scmp.ge.s32.totalorder %s34, 2
      %s36 = scalar_select %p35, 0, %s34
      %s37 = ssub.s32 %s24, %s36
      %p38 = scmp.eq.s32.totalorder %s37, 0
      %s40 = sadd.s32 %s39, 1
      %s41 = scalar_select %p38, %s39, %s40
      %p44 = pneg %p38
      %p45 = scmp.eq.s32.totalorder %s17, 3
      %p46 = por %p44, %p45
      %p47 = scmp.ne.s32.totalorder %s39, %s42
      %p48 = scmp.eq.s32.totalorder %s17, 0
      %p49 = por %p47, %p48
      %p50 = scmp.ne.s32.totalorder %s39, %s42
      %p51 = scmp.eq.s32.totalorder %s22, 3
      %p52 = por %p50, %p51
      %p53 = scmp.ne.s32.totalorder %s42, %s43
      %p54 = scmp.eq.s32.totalorder %s22, 0
      %p55 = por %p53, %p54
      %p56 = scmp.ne.s32.totalorder %s42, %s43
      %p57 = scmp.eq.s32.totalorder %s23, 3
      %p58 = por %p56, %p57
      %p60 = scmp.ne.s32.totalorder %s43, %s59
      %p61 = scmp.eq.s32.totalorder %s23, 0
      %p62 = por %p60, %p61
      %s64 = sadd.s32 %s63, 1
      %p67 = scmp.eq.s32.totalorder %s17, 3
      %p68 = scmp.ne.s32.totalorder %s63, %s65
      %p69 = scmp.eq.s32.totalorder %s17, 0
      %p70 = por %p68, %p69
      %p71 = scmp.ne.s32.totalorder %s63, %s65
      %p72 = scmp.eq.s32.totalorder %s22, 3
      %p73 = por %p71, %p72
      %p74 = scmp.ne.s32.totalorder %s65, %s66
      %p75 = scmp.eq.s32.totalorder %s22, 0
      %p76 = por %p74, %p75
      %p77 = scmp.ne.s32.totalorder %s65, %s66
      %p78 = scmp.eq.s32.totalorder %s23, 3
      %p79 = por %p77, %p78
      %p81 = scmp.ne.s32.totalorder %s66, %s80
      %p82 = scmp.eq.s32.totalorder %s23, 0
      %p83 = por %p81, %p82
      %s85 = sadd.s32 %s84, 1
      %p88 = scmp.eq.s32.totalorder %s17, 3
      %p89 = scmp.ne.s32.totalorder %s84, %s86
      %p90 = scmp.eq.s32.totalorder %s17, 0
      %p91 = por %p89, %p90
      %p92 = scmp.ne.s32.totalorder %s84, %s86
      %p93 = scmp.eq.s32.totalorder %s22, 3
      %p94 = por %p92, %p93
      %p95 = scmp.ne.s32.totalorder %s86, %s87
      %p96 = scmp.eq.s32.totalorder %s22, 0
      %p97 = por %p95, %p96
      %p98 = scmp.ne.s32.totalorder %s86, %s87
      %p99 = scmp.eq.s32.totalorder %s23, 3
      %p100 = por %p98, %p99
      %p102 = scmp.ne.s32.totalorder %s87, %s101
      %p103 = scmp.eq.s32.totalorder %s23, 0
      %p104 = por %p102, %p103
      %s106 = sadd.s32 %s105, 1
      %p109 = scmp.eq.s32.totalorder %s17, 3
      %p110 = scmp.ne.s32.totalorder %s105, %s107
      %p111 = scmp.eq.s32.totalorder %s17, 0
      %p112 = por %p110, %p111
      %p113 = scmp.ne.s32.totalorder %s105, %s107
      %p114 = scmp.eq.s32.totalorder %s22, 3
      %p115 = por %p113, %p114
      %p116 = scmp.ne.s32.totalorder %s107, %s108
      %p117 = scmp.eq.s32.totalorder %s22, 0
      %p118 = por %p116, %p117
      %p119 = scmp.ne.s32.totalorder %s107, %s108
      %p120 = scmp.eq.s32.totalorder %s23, 3
      %p121 = por %p119, %p120
      %p123 = scmp.ne.s32.totalorder %s108, %s122
      %p124 = scmp.eq.s32.totalorder %s23, 0
      %p125 = por %p123, %p124
      %s127 = sadd.s32 %s126, 1
      %p130 = scmp.eq.s32.totalorder %s17, 3
      %p131 = scmp.ne.s32.totalorder %s126, %s128
      %p132 = scmp.eq.s32.totalorder %s17, 0
      %p133 = por %p131, %p132
      %p134 = scmp.ne.s32.totalorder %s126, %s128
      %p135 = scmp.eq.s32.totalorder %s22, 3
      %p136 = por %p134, %p135
      %p137 = scmp.ne.s32.totalorder %s128, %s129
      %p138 = scmp.eq.s32.totalorder %s22, 0
      %p139 = por %p137, %p138
      %p140 = scmp.ne.s32.totalorder %s128, %s129
      %p141 = scmp.eq.s32.totalorder %s23, 3
      %p142 = por %p140, %p141
      %p144 = scmp.ne.s32.totalorder %s129, %s143
      %p145 = scmp.eq.s32.totalorder %s23, 0
      %p146 = por %p144, %p145
      %s147 = ssub.s32 %s25, %s32
      %p148 = scmp.eq.s32.totalorder %s147, 0
      %s150 = sadd.s32 %s149, 1
      %s151 = scalar_select %p148, %s149, %s150
      %p154 = pneg %p148
      %p155 = scmp.eq.s32.totalorder %s17, 3
      %p156 = por %p154, %p155
      %p157 = scmp.ne.s32.totalorder %s149, %s152
      %p158 = scmp.eq.s32.totalorder %s17, 0
      %p159 = por %p157, %p158
      %p160 = scmp.ne.s32.totalorder %s149, %s152
      %p161 = scmp.eq.s32.totalorder %s22, 3
      %p162 = por %p160, %p161
      %p163 = scmp.ne.s32.totalorder %s152, %s153
      %p164 = scmp.eq.s32.totalorder %s22, 0
      %p165 = por %p163, %p164
      %p166 = scmp.ne.s32.totalorder %s152, %s153
      %p167 = scmp.eq.s32.totalorder %s23, 3
      %p168 = por %p166, %p167
      %p170 = scmp.ne.s32.totalorder %s153, %s169
      %p171 = scmp.eq.s32.totalorder %s23, 0
      %p172 = por %p170, %p171
      %s173 = ssub.s32 %s25, %s32
      %p174 = scmp.eq.s32.totalorder %s173, 0
      %s176 = sadd.s32 %s175, 1
      %s177 = scalar_select %p174, %s175, %s176
      %p180 = pneg %p174
      %p181 = scmp.eq.s32.totalorder %s17, 3
      %p182 = por %p180, %p181
      %p183 = scmp.ne.s32.totalorder %s175, %s178
      %p184 = scmp.eq.s32.totalorder %s17, 0
      %p185 = por %p183, %p184
      %p186 = scmp.ne.s32.totalorder %s175, %s178
      %p187 = scmp.eq.s32.totalorder %s22, 3
      %p188 = por %p186, %p187
      %p189 = scmp.ne.s32.totalorder %s178, %s179
      %p190 = scmp.eq.s32.totalorder %s22, 0
      %p191 = por %p189, %p190
      %p192 = scmp.ne.s32.totalorder %s178, %s179
      %p193 = scmp.eq.s32.totalorder %s23, 3
      %p194 = por %p192, %p193
      %p196 = scmp.ne.s32.totalorder %s179, %s195
      %p197 = scmp.eq.s32.totalorder %s23, 0
      %p198 = por %p196, %p197
      %s199 = ssub.s32 %s25, %s32
      %p200 = scmp.eq.s32.totalorder %s199, 0
      %s202 = sadd.s32 %s201, 1
      %s203 = scalar_select %p200, %s201, %s202
      %p206 = pneg %p200
      %p207 = scmp.eq.s32.totalorder %s17, 3
      %p208 = por %p206, %p207
      %p209 = scmp.ne.s32.totalorder %s201, %s204
      %p210 = scmp.eq.s32.totalorder %s17, 0
      %p211 = por %p209, %p210
      %p212 = scmp.ne.s32.totalorder %s201, %s204
      %p213 = scmp.eq.s32.totalorder %s22, 3
      %p214 = por %p212, %p213
      %p215 = scmp.ne.s32.totalorder %s204, %s205
      %p216 = scmp.eq.s32.totalorder %s22, 0
      %p217 = por %p215, %p216
      %p218 = scmp.ne.s32.totalorder %s204, %s205
      %p219 = scmp.eq.s32.totalorder %s23, 3
      %p220 = por %p218, %p219
      %p222 = scmp.ne.s32.totalorder %s205, %s221
      %p223 = scmp.eq.s32.totalorder %s23, 0
      %p224 = por %p222, %p223
      %s225 = ssub.s32 %s24, %s36
      %p226 = scmp.eq.s32.totalorder %s225, 0
      %s228 = sadd.s32 %s227, 1
      %s229 = scalar_select %p226, %s227, %s228
      %p232 = pneg %p226
      %p233 = scmp.eq.s32.totalorder %s17, 3
      %p234 = por %p232, %p233
      %p235 = scmp.ne.s32.totalorder %s227, %s230
      %p236 = scmp.eq.s32.totalorder %s17, 0
      %p237 = por %p235, %p236
      %p238 = scmp.ne.s32.totalorder %s227, %s230
      %p239 = scmp.eq.s32.totalorder %s22, 3
      %p240 = por %p238, %p239
      %p241 = scmp.ne.s32.totalorder %s230, %s231
      %p242 = scmp.eq.s32.totalorder %s22, 0
      %p243 = por %p241, %p242
      %p244 = scmp.ne.s32.totalorder %s230, %s231
      %p245 = scmp.eq.s32.totalorder %s23, 3
      %p246 = por %p244, %p245
      %p248 = scmp.ne.s32.totalorder %s231, %s247
      %p249 = scmp.eq.s32.totalorder %s23, 0
      %p250 = por %p248, %p249
      %p251 = scmp.le.s32.totalorder 1, %s17
      %p252 = scmp.lt.s32.totalorder %s17, 5
      %p253 = pnand %p251, %p252
      %p254 = pneg %p253
      // Predicated region
      $region9: #{decoder_layer.3} parent=5 // pred_check
        _
      $region10: #{decoder_layer.3} parent=5 // pred_check_branch
        %256 = sbr.rel (%p253) target = $region12
      $region11: #{decoder_layer.3} parent=5 // pred_region
        %s257 = ssub.s32 %s17, 1
        // Predicated region
        $region13: #{decoder_layer.3} parent=11 // pred_check
          %p258 = pneg %p76
        $region14: #{decoder_layer.3} parent=11 // pred_check_branch
          %260 = sbr.rel (%p258) target = $region16
        $region15: #{decoder_layer.3} parent=11 // pred_region
          _
        $region16: #{decoder_layer.3} parent=11 // pred_fallthru
          _
        // Predicated region
        $region17: #{decoder_layer.3} parent=11 // pred_check
          %p261 = pneg %p97
        $region18: #{decoder_layer.3} parent=11 // pred_check_branch
          %263 = sbr.rel (%p261) target = $region20
        $region19: #{decoder_layer.3} parent=11 // pred_region
          _
        $region20: #{decoder_layer.3} parent=11 // pred_fallthru
          _
        // Predicated region
        $region21: #{decoder_layer.3} parent=11 // pred_check
          %p264 = pneg %p118
        $region22: #{decoder_layer.3} parent=11 // pred_check_branch
          %266 = sbr.rel (%p264) target = $region24
        $region23: #{decoder_layer.3} parent=11 // pred_region
          _
        $region24: #{decoder_layer.3} parent=11 // pred_fallthru
          _
        // Predicated region
        $region25: #{decoder_layer.3} parent=11 // pred_check
          %p267 = pneg %p139
        $region26: #{decoder_layer.3} parent=11 // pred_check_branch
          %269 = sbr.rel (%p267) target = $region28
        $region27: #{decoder_layer.3} parent=11 // pred_region
          _
        $region28: #{decoder_layer.3} parent=11 // pred_fallthru
          _
      $region12: #{decoder_layer.3} parent=5 // pred_fallthru
        _
      %p270 = scmp.lt.s32.totalorder %s17, 4
      // Predicated region
      $region29: #{decoder_layer.3} parent=5 // pred_check
        %p271 = pneg %p270
      $region30: #{decoder_layer.3} parent=5 // pred_check_branch
        %273 = sbr.rel (%p271) target = $region32
      $region31: #{decoder_layer.3} parent=5 // pred_region
        // Predicated region
        $region33: #{decoder_layer.3} parent=31 // pred_check
          %p274 = pneg %p49
        $region34: #{decoder_layer.3} parent=31 // pred_check_branch
          %276 = sbr.rel (%p274) target = $region36
        $region35: #{decoder_layer.3} parent=31 // pred_region
          %s277 = smul.u32 2, %s24
          %p278 = scmp.lt.s32.totalorder %s277, 3
          %s279 = scalar_select %p278, %s277, 3
          %s280 = smul.addr %s279, 8
          %s281 = scalar_lea.vmem %s0, %s280
          %s282 = smul.u32 2, %s24
        $region36: #{decoder_layer.3} parent=31 // pred_fallthru
          _
        // Predicated region
        $region37: #{decoder_layer.3} parent=31 // pred_check
          %p283 = pneg %p159
        $region38: #{decoder_layer.3} parent=31 // pred_check_branch
          %285 = sbr.rel (%p283) target = $region40
        $region39: #{decoder_layer.3} parent=31 // pred_region
          %s286 = sand.u32 %s149, 1
          %s287 = sand.u32 %s149, 1
          %s288 = smul.addr %s287, 128
          %s289 = scalar_lea.vmem [#allocation5], %s288
          %s290 = smul.u32 2, %s25
          %s291 = smul.addr %s290, 4
          %s292 = scalar_lea.vmem %s5, %s291
          // Predicated region
          $region41: #{decoder_layer.3} parent=39 // pred_check
            _
          $region42: #{decoder_layer.3} parent=39 // pred_check_branch
            %294 = sbr.rel (0) target = $region44
          $region43: #{decoder_layer.3} parent=39 // pred_region
            // Predicated region
            $region45: #{decoder_layer.3} parent=43 // pred_check
              _
            $region46: #{decoder_layer.3} parent=43 // pred_check_branch
              %296 = sbr.rel (0) target = $region48
            $region47: #{decoder_layer.3} parent=43 // pred_region
              // Predicated region
              $region60: #{decoder_layer.3} parent=47 // pred_check
                _
              $region61: #{decoder_layer.3} parent=47 // pred_check_branch
                %341 = sbr.rel (0) target = $region63
              $region62: #{decoder_layer.3} parent=47 // pred_region
                loop: start=0, step=1, limit=1
                $region64: #{decoder_layer.3} parent=62 // loop_pre_header
                  _
                $region65: #{decoder_layer.3} parent=62 // loop_header
                  %s343 = sphi 0, %s347
                  %p344 = scmp.ge.s32.totalorder %s343, 1
                  %s348 = sphi %s292, %s292
                  %s349 = sphi %s289, %s289
                $region66: #{decoder_layer.3} parent=62 // loop_header_branch
                  %346 = sbr.rel (%p344) target = $region70
                $region67: #{decoder_layer.3} parent=62 // loop_body
                  %v350 = vld [vmem:[%s348] sm:$0xff]
                  %351 = vst [vmem:[%s349] sm:$0xff] %v350
                  %v352 = vld [vmem:[%s348 + $0x10] sm:$0xff]
                  %353 = vst [vmem:[%s349 + $0x8] sm:$0xff] %v352
                  %v354 = vld [vmem:[%s348 + $0x20] sm:$0xff]
                  %355 = vst [vmem:[%s349 + $0x10] sm:$0xff] %v354
                  %v356 = vld [vmem:[%s348 + $0x30] sm:$0xff]
                  %357 = vst [vmem:[%s349 + $0x18] sm:$0xff] %v356
                  %v358 = vld [vmem:[%s348 + $0x40] sm:$0xff]
                  %359 = vst [vmem:[%s349 + $0x20] sm:$0xff] %v358
                  %v360 = vld [vmem:[%s348 + $0x50] sm:$0xff]
                  %361 = vst [vmem:[%s349 + $0x28] sm:$0xff] %v360
                  %v362 = vld [vmem:[%s348 + $0x60] sm:$0xff]
                  %363 = vst [vmem:[%s349 + $0x30] sm:$0xff] %v362
                  %v364 = vld [vmem:[%s348 + $0x70] sm:$0xff]
                  %365 = vst [vmem:[%s349 + $0x38] sm:$0xff] %v364
                  %v366 = vld [vmem:[%s348 + $0x80] sm:$0xff]
                  %367 = vst [vmem:[%s349 + $0x40] sm:$0xff] %v366
                  %v368 = vld [vmem:[%s348 + $0x90] sm:$0xff]
                  %369 = vst [vmem:[%s349 + $0x48] sm:$0xff] %v368
                  %v370 = vld [vmem:[%s348 + $0xa0] sm:$0xff]
                  %371 = vst [vmem:[%s349 + $0x50] sm:$0xff] %v370
                  %v372 = vld [vmem:[%s348 + $0xb0] sm:$0xff]
                  %373 = vst [vmem:[%s349 + $0x58] sm:$0xff] %v372
                  %v374 = vld [vmem:[%s348 + $0xc0] sm:$0xff]
                  %375 = vst [vmem:[%s349 + $0x60] sm:$0xff] %v374
                  %v376 = vld [vmem:[%s348 + $0xd0] sm:$0xff]
                  %377 = vst [vmem:[%s349 + $0x68] sm:$0xff] %v376
                  %v378 = vld [vmem:[%s348 + $0xe0] sm:$0xff]
                  %379 = vst [vmem:[%s349 + $0x70] sm:$0xff] %v378
                  %v380 = vld [vmem:[%s348 + $0xf0] sm:$0xff]
                  %381 = vst [vmem:[%s349 + $0x78] sm:$0xff] %v380
                $region68: #{decoder_layer.3} parent=62 // loop_footer
                  %s347 = sadd.s32 1, %s343
                $region69: #{decoder_layer.3} parent=62 // loop_footer_branch
                  %342 = sbr.rel target = $region65
                $region70: #{decoder_layer.3} parent=62 // loop_exit
                  _
              $region63: #{decoder_layer.3} parent=47 // pred_fallthru
                _
              // Predicated region
              $region71: #{decoder_layer.3} parent=47 // pred_check
                _
              $region72: #{decoder_layer.3} parent=47 // pred_check_branch
                %383 = sbr.rel target = $region74
              $region73: #{decoder_layer.3} parent=47 // pred_region
                _
              $region74: #{decoder_layer.3} parent=47 // pred_fallthru
                _
            $region48: #{decoder_layer.3} parent=43 // pred_fallthru
              _
            // Predicated region
            $region49: #{decoder_layer.3} parent=43 // pred_check
              _
            $region50: #{decoder_layer.3} parent=43 // pred_check_branch
              %298 = sbr.rel target = $region52
            $region51: #{decoder_layer.3} parent=43 // pred_region
              loop: start=0, step=1, limit=1
              $region53: #{decoder_layer.3} parent=51 // loop_pre_header
                _
              $region54: #{decoder_layer.3} parent=51 // loop_header
                %s301 = sphi 0, %s305
                %p302 = scmp.ge.s32.totalorder %s301, 1
                %s306 = sphi %s292, %s292
                %s307 = sphi %s289, %s289
              $region55: #{decoder_layer.3} parent=51 // loop_header_branch
                %304 = sbr.rel (%p302) target = $region59
              $region56: #{decoder_layer.3} parent=51 // loop_body
                %v308 = vld [vmem:[%s306] sm:$0xff]
                %309 = vst [vmem:[%s307] sm:$0xff] %v308
                %v310 = vld [vmem:[%s306 + $0x10] sm:$0xff]
                %311 = vst [vmem:[%s307 + $0x8] sm:$0xff] %v310
                %v312 = vld [vmem:[%s306 + $0x20] sm:$0xff]
                %313 = vst [vmem:[%s307 + $0x10] sm:$0xff] %v312
                %v314 = vld [vmem:[%s306 + $0x30] sm:$0xff]
                %315 = vst [vmem:[%s307 + $0x18] sm:$0xff] %v314
                %v316 = vld [vmem:[%s306 + $0x40] sm:$0xff]
                %317 = vst [vmem:[%s307 + $0x20] sm:$0xff] %v316
                %v318 = vld [vmem:[%s306 + $0x50] sm:$0xff]
                %319 = vst [vmem:[%s307 + $0x28] sm:$0xff] %v318
                %v320 = vld [vmem:[%s306 + $0x60] sm:$0xff]
                %321 = vst [vmem:[%s307 + $0x30] sm:$0xff] %v320
                %v322 = vld [vmem:[%s306 + $0x70] sm:$0xff]
                %323 = vst [vmem:[%s307 + $0x38] sm:$0xff] %v322
                %v324 = vld [vmem:[%s306 + $0x80] sm:$0xff]
                %325 = vst [vmem:[%s307 + $0x40] sm:$0xff] %v324
                %v326 = vld [vmem:[%s306 + $0x90] sm:$0xff]
                %327 = vst [vmem:[%s307 + $0x48] sm:$0xff] %v326
                %v328 = vld [vmem:[%s306 + $0xa0] sm:$0xff]
                %329 = vst [vmem:[%s307 + $0x50] sm:$0xff] %v328
                %v330 = vld [vmem:[%s306 + $0xb0] sm:$0xff]
                %331 = vst [vmem:[%s307 + $0x58] sm:$0xff] %v330
                %v332 = vld [vmem:[%s306 + $0xc0] sm:$0xff]
                %333 = vst [vmem:[%s307 + $0x60] sm:$0xff] %v332
                %v334 = vld [vmem:[%s306 + $0xd0] sm:$0xff]
                %335 = vst [vmem:[%s307 + $0x68] sm:$0xff] %v334
                %v336 = vld [vmem:[%s306 + $0xe0] sm:$0xff]
                %337 = vst [vmem:[%s307 + $0x70] sm:$0xff] %v336
                %v338 = vld [vmem:[%s306 + $0xf0] sm:$0xff]
                %339 = vst [vmem:[%s307 + $0x78] sm:$0xff] %v338
              $region57: #{decoder_layer.3} parent=51 // loop_footer
                %s305 = sadd.s32 1, %s301
              $region58: #{decoder_layer.3} parent=51 // loop_footer_branch
                %300 = sbr.rel target = $region54
              $region59: #{decoder_layer.3} parent=51 // loop_exit
                _
            $region52: #{decoder_layer.3} parent=43 // pred_fallthru
              _
          $region44: #{decoder_layer.3} parent=39 // pred_fallthru
            _
          %384 = vnop
        $region40: #{decoder_layer.3} parent=31 // pred_fallthru
          _
        // Predicated region
        $region75: #{decoder_layer.3} parent=31 // pred_check
          %p385 = pneg %p185
        $region76: #{decoder_layer.3} parent=31 // pred_check_branch
          %387 = sbr.rel (%p385) target = $region78
        $region77: #{decoder_layer.3} parent=31 // pred_region
          %s388 = sand.u32 %s175, 1
          %s389 = sand.u32 %s175, 1
          %s390 = smul.addr %s389, 128
          %s391 = scalar_lea.vmem [#allocation6], %s390
          %s392 = smul.u32 2, %s25
          %s393 = smul.addr %s392, 4
          %s394 = scalar_lea.vmem %s6, %s393
          // Predicated region
          $region79: #{decoder_layer.3} parent=77 // pred_check
            _
          $region80: #{decoder_layer.3} parent=77 // pred_check_branch
            %396 = sbr.rel (0) target = $region82
          $region81: #{decoder_layer.3} parent=77 // pred_region
            // Predicated region
            $region83: #{decoder_layer.3} parent=81 // pred_check
              _
            $region84: #{decoder_layer.3} parent=81 // pred_check_branch
              %398 = sbr.rel (0) target = $region86
            $region85: #{decoder_layer.3} parent=81 // pred_region
              // Predicated region
              $region98: #{decoder_layer.3} parent=85 // pred_check
                _
              $region99: #{decoder_layer.3} parent=85 // pred_check_branch
                %443 = sbr.rel (0) target = $region101
              $region100: #{decoder_layer.3} parent=85 // pred_region
                loop: start=0, step=1, limit=1
                $region102: #{decoder_layer.3} parent=100 // loop_pre_header
                  _
                $region103: #{decoder_layer.3} parent=100 // loop_header
                  %s445 = sphi 0, %s449
                  %p446 = scmp.ge.s32.totalorder %s445, 1
                  %s450 = sphi %s394, %s394
                  %s451 = sphi %s391, %s391
                $region104: #{decoder_layer.3} parent=100 // loop_header_branch
                  %448 = sbr.rel (%p446) target = $region108
                $region105: #{decoder_layer.3} parent=100 // loop_body
                  %v452 = vld [vmem:[%s450] sm:$0xff]
                  %453 = vst [vmem:[%s451] sm:$0xff] %v452
                  %v454 = vld [vmem:[%s450 + $0x10] sm:$0xff]
                  %455 = vst [vmem:[%s451 + $0x8] sm:$0xff] %v454
                  %v456 = vld [vmem:[%s450 + $0x20] sm:$0xff]
                  %457 = vst [vmem:[%s451 + $0x10] sm:$0xff] %v456
                  %v458 = vld [vmem:[%s450 + $0x30] sm:$0xff]
                  %459 = vst [vmem:[%s451 + $0x18] sm:$0xff] %v458
                  %v460 = vld [vmem:[%s450 + $0x40] sm:$0xff]
                  %461 = vst [vmem:[%s451 + $0x20] sm:$0xff] %v460
                  %v462 = vld [vmem:[%s450 + $0x50] sm:$0xff]
                  %463 = vst [vmem:[%s451 + $0x28] sm:$0xff] %v462
                  %v464 = vld [vmem:[%s450 + $0x60] sm:$0xff]
                  %465 = vst [vmem:[%s451 + $0x30] sm:$0xff] %v464
                  %v466 = vld [vmem:[%s450 + $0x70] sm:$0xff]
                  %467 = vst [vmem:[%s451 + $0x38] sm:$0xff] %v466
                  %v468 = vld [vmem:[%s450 + $0x80] sm:$0xff]
                  %469 = vst [vmem:[%s451 + $0x40] sm:$0xff] %v468
                  %v470 = vld [vmem:[%s450 + $0x90] sm:$0xff]
                  %471 = vst [vmem:[%s451 + $0x48] sm:$0xff] %v470
                  %v472 = vld [vmem:[%s450 + $0xa0] sm:$0xff]
                  %473 = vst [vmem:[%s451 + $0x50] sm:$0xff] %v472
                  %v474 = vld [vmem:[%s450 + $0xb0] sm:$0xff]
                  %475 = vst [vmem:[%s451 + $0x58] sm:$0xff] %v474
                  %v476 = vld [vmem:[%s450 + $0xc0] sm:$0xff]
                  %477 = vst [vmem:[%s451 + $0x60] sm:$0xff] %v476
                  %v478 = vld [vmem:[%s450 + $0xd0] sm:$0xff]
                  %479 = vst [vmem:[%s451 + $0x68] sm:$0xff] %v478
                  %v480 = vld [vmem:[%s450 + $0xe0] sm:$0xff]
                  %481 = vst [vmem:[%s451 + $0x70] sm:$0xff] %v480
                  %v482 = vld [vmem:[%s450 + $0xf0] sm:$0xff]
                  %483 = vst [vmem:[%s451 + $0x78] sm:$0xff] %v482
                $region106: #{decoder_layer.3} parent=100 // loop_footer
                  %s449 = sadd.s32 1, %s445
                $region107: #{decoder_layer.3} parent=100 // loop_footer_branch
                  %444 = sbr.rel target = $region103
                $region108: #{decoder_layer.3} parent=100 // loop_exit
                  _
              $region101: #{decoder_layer.3} parent=85 // pred_fallthru
                _
              // Predicated region
              $region109: #{decoder_layer.3} parent=85 // pred_check
                _
              $region110: #{decoder_layer.3} parent=85 // pred_check_branch
                %485 = sbr.rel target = $region112
              $region111: #{decoder_layer.3} parent=85 // pred_region
                _
              $region112: #{decoder_layer.3} parent=85 // pred_fallthru
                _
            $region86: #{decoder_layer.3} parent=81 // pred_fallthru
              _
            // Predicated region
            $region87: #{decoder_layer.3} parent=81 // pred_check
              _
            $region88: #{decoder_layer.3} parent=81 // pred_check_branch
              %400 = sbr.rel target = $region90
            $region89: #{decoder_layer.3} parent=81 // pred_region
              loop: start=0, step=1, limit=1
              $region91: #{decoder_layer.3} parent=89 // loop_pre_header
                _
              $region92: #{decoder_layer.3} parent=89 // loop_header
                %s403 = sphi 0, %s407
                %p404 = scmp.ge.s32.totalorder %s403, 1
                %s408 = sphi %s394, %s394
                %s409 = sphi %s391, %s391
              $region93: #{decoder_layer.3} parent=89 // loop_header_branch
                %406 = sbr.rel (%p404) target = $region97
              $region94: #{decoder_layer.3} parent=89 // loop_body
                %v410 = vld [vmem:[%s408] sm:$0xff]
                %411 = vst [vmem:[%s409] sm:$0xff] %v410
                %v412 = vld [vmem:[%s408 + $0x10] sm:$0xff]
                %413 = vst [vmem:[%s409 + $0x8] sm:$0xff] %v412
                %v414 = vld [vmem:[%s408 + $0x20] sm:$0xff]
                %415 = vst [vmem:[%s409 + $0x10] sm:$0xff] %v414
                %v416 = vld [vmem:[%s408 + $0x30] sm:$0xff]
                %417 = vst [vmem:[%s409 + $0x18] sm:$0xff] %v416
                %v418 = vld [vmem:[%s408 + $0x40] sm:$0xff]
                %419 = vst [vmem:[%s409 + $0x20] sm:$0xff] %v418
                %v420 = vld [vmem:[%s408 + $0x50] sm:$0xff]
                %421 = vst [vmem:[%s409 + $0x28] sm:$0xff] %v420
                %v422 = vld [vmem:[%s408 + $0x60] sm:$0xff]
                %423 = vst [vmem:[%s409 + $0x30] sm:$0xff] %v422
                %v424 = vld [vmem:[%s408 + $0x70] sm:$0xff]
                %425 = vst [vmem:[%s409 + $0x38] sm:$0xff] %v424
                %v426 = vld [vmem:[%s408 + $0x80] sm:$0xff]
                %427 = vst [vmem:[%s409 + $0x40] sm:$0xff] %v426
                %v428 = vld [vmem:[%s408 + $0x90] sm:$0xff]
                %429 = vst [vmem:[%s409 + $0x48] sm:$0xff] %v428
                %v430 = vld [vmem:[%s408 + $0xa0] sm:$0xff]
                %431 = vst [vmem:[%s409 + $0x50] sm:$0xff] %v430
                %v432 = vld [vmem:[%s408 + $0xb0] sm:$0xff]
                %433 = vst [vmem:[%s409 + $0x58] sm:$0xff] %v432
                %v434 = vld [vmem:[%s408 + $0xc0] sm:$0xff]
                %435 = vst [vmem:[%s409 + $0x60] sm:$0xff] %v434
                %v436 = vld [vmem:[%s408 + $0xd0] sm:$0xff]
                %437 = vst [vmem:[%s409 + $0x68] sm:$0xff] %v436
                %v438 = vld [vmem:[%s408 + $0xe0] sm:$0xff]
                %439 = vst [vmem:[%s409 + $0x70] sm:$0xff] %v438
                %v440 = vld [vmem:[%s408 + $0xf0] sm:$0xff]
                %441 = vst [vmem:[%s409 + $0x78] sm:$0xff] %v440
              $region95: #{decoder_layer.3} parent=89 // loop_footer
                %s407 = sadd.s32 1, %s403
              $region96: #{decoder_layer.3} parent=89 // loop_footer_branch
                %402 = sbr.rel target = $region92
              $region97: #{decoder_layer.3} parent=89 // loop_exit
                _
            $region90: #{decoder_layer.3} parent=81 // pred_fallthru
              _
          $region82: #{decoder_layer.3} parent=77 // pred_fallthru
            _
          %486 = vnop
        $region78: #{decoder_layer.3} parent=31 // pred_fallthru
          _
        // Predicated region
        $region113: #{decoder_layer.3} parent=31 // pred_check
          %p487 = pneg %p211
        $region114: #{decoder_layer.3} parent=31 // pred_check_branch
          %489 = sbr.rel (%p487) target = $region116
        $region115: #{decoder_layer.3} parent=31 // pred_region
          %s490 = smul.u32 32, %s25
          %p491 = scmp.lt.s32.totalorder %s490, 63
          %s492 = scalar_select %p491, %s490, 63
          %s493 = smul.addr %s492, 4
          %s494 = scalar_lea.vmem %s7, %s493
          %s495 = smul.u32 32, %s25
        $region116: #{decoder_layer.3} parent=31 // pred_fallthru
          _
      $region32: #{decoder_layer.3} parent=5 // pred_fallthru
        _
      %p496 = scmp.le.s32.totalorder 1, %s17
      %p497 = scmp.lt.s32.totalorder %s17, 5
      %p498 = pnand %p496, %p497
      %p499 = pneg %p498
      // Predicated region
      $region117: #{decoder_layer.3} parent=5 // pred_check
        _
      $region118: #{decoder_layer.3} parent=5 // pred_check_branch
        %501 = sbr.rel (%p498) target = $region120
      $region119: #{decoder_layer.3} parent=5 // pred_region
        %s502 = ssub.s32 %s17, 1
        %s503 = sand.u32 %s152, 1
        %s504 = sand.u32 %s152, 1
        %s505 = smul.addr %s504, 128
        %s506 = scalar_lea.vmem [#allocation5], %s505
        // Predicated region
        $region121: #{decoder_layer.3} parent=119 // pred_check
          %p507 = pneg %p165
        $region122: #{decoder_layer.3} parent=119 // pred_check_branch
          %509 = sbr.rel (%p507) target = $region124
        $region123: #{decoder_layer.3} parent=119 // pred_region
          _
        $region124: #{decoder_layer.3} parent=119 // pred_fallthru
          _
        %s510 = sand.u32 %s178, 1
        %s511 = sand.u32 %s178, 1
        %s512 = smul.addr %s511, 128
        %s513 = scalar_lea.vmem [#allocation6], %s512
        // Predicated region
        $region125: #{decoder_layer.3} parent=119 // pred_check
          %p514 = pneg %p191
        $region126: #{decoder_layer.3} parent=119 // pred_check_branch
          %516 = sbr.rel (%p514) target = $region128
        $region127: #{decoder_layer.3} parent=119 // pred_region
          _
        $region128: #{decoder_layer.3} parent=119 // pred_fallthru
          _
        %s517 = smul.u32 2, %s26
        %p518 = scmp.lt.s32.totalorder %s517, 3
        %s519 = scalar_select %p518, %s517, 3
        %s520 = smul.addr %s519, 8
        %s521 = scalar_lea.vmem %s0, %s520
        %p522 = pneg %p55
        %p523 = pneg %p52
        %p524 = pneg %p76
        %p525 = pneg %p73
        %p526 = pneg %p97
        %p527 = pneg %p94
        %p528 = pneg %p118
        %p529 = pneg %p115
        %p530 = pneg %p139
        %p531 = pneg %p136
        %s532 = sand.u32 %s152, 1
        %s533 = sand.u32 %s152, 1
        %s534 = smul.addr %s533, 128
        %s535 = scalar_lea.vmem [#allocation5], %s534
        %p536 = pneg %p165
        %p537 = pneg %p162
        %s538 = sand.u32 %s178, 1
        %s539 = sand.u32 %s178, 1
        %s540 = smul.addr %s539, 128
        %s541 = scalar_lea.vmem [#allocation6], %s540
        %p542 = pneg %p191
        %p543 = pneg %p188
        %s544 = smul.u32 32, %s27
        %p545 = scmp.lt.s32.totalorder %s544, 63
        %s546 = scalar_select %p545, %s544, 63
        %s547 = smul.addr %s546, 4
        %s548 = scalar_lea.vmem %s7, %s547
        %p549 = pneg %p217
        %p550 = pneg %p214
        %p551 = pneg %p243
        %p552 = pneg %p240
        %s553 = sand.u32 %s230, 1
        %s554 = scalar_lea.sflag [#allocation8], %s553
        %s555 = sand.u32 %s230, 1
        %s556 = smul.addr %s555, 16
        %s557 = scalar_lea.vmem [#allocation7], %s556
        %s558 = smul.u32 2, %s26
        %p559 = scmp.lt.s32.totalorder %s558, 3
        %s560 = scalar_select %p559, %s558, 3
        %s561 = smul.addr %s560, 8
        %s562 = scalar_lea.vmem %s0, %s561
        %s563 = smul.u32 2, %s26
        %s564 = smul.u32 2, %s27
        %s565 = smul.u32 2, %s27
        %s566 = smul.u32 32, %s27
        %p567 = scmp.lt.s32.totalorder %s566, 63
        %s568 = scalar_select %p567, %s566, 63
        %s569 = smul.addr %s568, 4
        %s570 = scalar_lea.vmem %s7, %s569
        %s571 = smul.u32 32, %s27
        %s572 = smul.u32 2, %s26
        %p574 = scmp.eq.s32.totalorder %s27, 0
        // Predicated region
        $region129: #{decoder_layer.3} parent=119 // pred_check
          %p575 = pneg %p574
        $region130: #{decoder_layer.3} parent=119 // pred_check_branch
          %577 = sbr.rel (%p575) target = $region132
        $region131: #{decoder_layer.3} parent=119 // pred_region
          %v578 = vld [vmem:[%s562] sm:$0xff]
          %v579 = vld [vmem:[%s562 + $0x8] sm:$0xff]
          %v580 = vld [vmem:[%s1] sm:$0x1]
          %v581 = vmul.f32 %v578, %v578
          %v582 = vmul.f32 %v579, %v579
          %583 = vadd.xlane.f32.xlu0 %v581
          %v584 = vpop.xlane.xlu0 %583
          %585 = vadd.xlane.f32.xlu0 %v582
          %v586 = vpop.xlane.xlu0 %585
          %v587 = vrcp.pop 128.0
          %v588 = vmul.f32 %v584, %v587
          %v589 = vmul.f32 %v586, %v587
          %v590 = vadd.f32 %v588, 1e-06
          %v591 = vadd.f32 %v589, 1e-06
          %v592 = vrsqrt.pop %v590
          %v593 = vrsqrt.pop %v591
          %v594 = vmul.f32 %v578, %v592
          %v595 = vmul.f32 %v579, %v593
          %v597 = vlaneseq
          %v598 = vshrl.u32 %v597, 7
          %v599 = vsub.s32 0, %v598
          %v600 = vrot.slane %v580, %v599
          %v602 = vmul.f32 %v594, %v600
          %v603 = vmul.f32 %v595, %v600
          %v604 = vld [vmem:[%s3] sm:$0x1]
          %v606 = vlaneseq
          %v607 = vshrl.u32 %v606, 7
          %v608 = vsub.s32 0, %v607
          %v609 = vrot.slane %v604, %v608
          %v611 = vsub.f32 %v602, %v609
          %v612 = vsub.f32 %v603, %v609
          %v613 = vld [vmem:[%s4] sm:$0x1]
          %v615 = vlaneseq
          %v616 = vshrl.u32 %v615, 7
          %v617 = vsub.s32 0, %v616
          %v618 = vrot.slane %v613, %v617
          %v620 = vmul.f32 %v611, %v618
          %v621 = vmul.f32 %v612, %v618
          %v622 = vround.ne.pseudo %v620
          %v623 = vround.ne.pseudo %v621
          %v624 = vadd.f32 %v578, %v622
          %v625 = vadd.f32 %v579, %v623
          %626 = vst [vmem:[#allocation3] sm:$0xff] %v624
          %627 = vst [vmem:[#allocation3 + $0x8] sm:$0xff] %v625
          %v628 = vld [vmem:[%s2] sm:$0x1]
          %v629 = vmul.f32 %v624, %v624
          %v630 = vmul.f32 %v625, %v625
          %631 = vadd.xlane.f32.xlu0 %v629
          %v632 = vpop.xlane.xlu0 %631
          %633 = vadd.xlane.f32.xlu0 %v630
          %v634 = vpop.xlane.xlu0 %633
          %v635 = vmul.f32 %v632, %v587
          %v636 = vmul.f32 %v634, %v587
          %v637 = vadd.f32 %v635, 1e-06
          %v638 = vadd.f32 %v636, 1e-06
          %v639 = vrsqrt.pop %v637
          %v640 = vrsqrt.pop %v638
          %v641 = vmul.f32 %v624, %v639
          %v642 = vmul.f32 %v625, %v640
          %v644 = vlaneseq
          %v645 = vshrl.u32 %v644, 7
          %v646 = vsub.s32 0, %v645
          %v647 = vrot.slane %v628, %v646
          %v649 = vmul.f32 %v641, %v647
          %v650 = vmul.f32 %v642, %v647
          %v651 = vpack.c.bf16 %v650, %v649
          %652 = vst [vmem:[#allocation4] sm:$0xff] %v651
          %653 = vst [vmem:[#allocation2] sm:$0xff] 0.0
          %654 = vst [vmem:[#allocation2 + $0x8] sm:$0xff] 0.0
        $region132: #{decoder_layer.3} parent=119 // pred_fallthru
          _
        %v655 = vld [vmem:[#allocation4] sm:$0xff]
        %v656 = vld [vmem:[%s506] sm:$0xff]
        %v657 = vld [vmem:[%s506 + $0x8] sm:$0xff]
        %v658 = vld [vmem:[%s506 + $0x10] sm:$0xff]
        %v659 = vld [vmem:[%s506 + $0x18] sm:$0xff]
        %v660 = vld [vmem:[%s506 + $0x20] sm:$0xff]
        %v661 = vld [vmem:[%s506 + $0x28] sm:$0xff]
        %v662 = vld [vmem:[%s506 + $0x30] sm:$0xff]
        %v663 = vld [vmem:[%s506 + $0x38] sm:$0xff]
        %v664 = vld [vmem:[%s506 + $0x40] sm:$0xff]
        %v665 = vld [vmem:[%s506 + $0x48] sm:$0xff]
        %v666 = vld [vmem:[%s506 + $0x50] sm:$0xff]
        %v667 = vld [vmem:[%s506 + $0x58] sm:$0xff]
        %v668 = vld [vmem:[%s506 + $0x60] sm:$0xff]
        %v669 = vld [vmem:[%s506 + $0x68] sm:$0xff]
        %v670 = vld [vmem:[%s506 + $0x70] sm:$0xff]
        %v671 = vld [vmem:[%s506 + $0x78] sm:$0xff]
        %v688 = vunpack.c.l.b16 %v656
        %v689 = vunpack.c.h.b16 %v656
        %v690 = vunpack.c.l.b16 %v657
        %v691 = vunpack.c.h.b16 %v657
        %v692 = vunpack.c.l.b16 %v658
        %v693 = vunpack.c.h.b16 %v658
        %v694 = vunpack.c.l.b16 %v659
        %v695 = vunpack.c.h.b16 %v659
        %v696 = vunpack.c.l.b16 %v660
        %v697 = vunpack.c.h.b16 %v660
        %v698 = vunpack.c.l.b16 %v661
        %v699 = vunpack.c.h.b16 %v661
        %v700 = vunpack.c.l.b16 %v662
        %v701 = vunpack.c.h.b16 %v662
        %v702 = vunpack.c.l.b16 %v663
        %v703 = vunpack.c.h.b16 %v663
        %v704 = vunpack.c.l.b16 %v664
        %v705 = vunpack.c.h.b16 %v664
        %v706 = vunpack.c.l.b16 %v665
        %v707 = vunpack.c.h.b16 %v665
        %v708 = vunpack.c.l.b16 %v666
        %v709 = vunpack.c.h.b16 %v666
        %v710 = vunpack.c.l.b16 %v667
        %v711 = vunpack.c.h.b16 %v667
        %v712 = vunpack.c.l.b16 %v668
        %v713 = vunpack.c.h.b16 %v668
        %v714 = vunpack.c.l.b16 %v669
        %v715 = vunpack.c.h.b16 %v669
        %v716 = vunpack.c.l.b16 %v670
        %v717 = vunpack.c.h.b16 %v670
        %v718 = vunpack.c.l.b16 %v671
        %v719 = vunpack.c.h.b16 %v671
        %v720 = vpack.c.b16 %v690, %v688
        %v721 = vpack.c.b16 %v691, %v689
        %v722 = vpack.c.b16 %v694, %v692
        %v723 = vpack.c.b16 %v695, %v693
        %v724 = vpack.c.b16 %v698, %v696
        %v725 = vpack.c.b16 %v699, %v697
        %v726 = vpack.c.b16 %v702, %v700
        %v727 = vpack.c.b16 %v703, %v701
        %v728 = vpack.c.b16 %v706, %v704
        %v729 = vpack.c.b16 %v707, %v705
        %v730 = vpack.c.b16 %v710, %v708
        %v731 = vpack.c.b16 %v711, %v709
        %v732 = vpack.c.b16 %v714, %v712
        %v733 = vpack.c.b16 %v715, %v713
        %v734 = vpack.c.b16 %v718, %v716
        %v735 = vpack.c.b16 %v719, %v717
        %752 = vmatprep.subr.bf16.mxu0 %v721
        %753 = vmatpush1.bf16.msra.mxu0 %v720
        %754 = vmatprep.subr.bf16.mxu0 %v723
        %755 = vmatpush1.bf16.msra.mxu0 %v722
        %756 = vmatprep.subr.bf16.mxu0 %v725
        %757 = vmatpush1.bf16.msra.mxu0 %v724
        %758 = vmatprep.subr.bf16.mxu0 %v727
        %759 = vmatpush1.bf16.msra.mxu0 %v726
        %760 = vmatprep.subr.bf16.mxu0 %v729
        %761 = vmatpush1.bf16.msra.mxu0 %v728
        %762 = vmatprep.subr.bf16.mxu0 %v731
        %763 = vmatpush1.bf16.msra.mxu0 %v730
        %764 = vmatprep.subr.bf16.mxu0 %v733
        %765 = vmatpush1.bf16.msra.mxu0 %v732
        %766 = vmatprep.subr.bf16.mxu0 %v735
        %767 = vmatpush1.bf16.msra.mxu0 %v734
        %768 = vmatprep.subr.bf16.mxu0 0
        %769 = vmatpush1.bf16.msra.mxu0 0
        %770 = vmatprep.subr.bf16.mxu0 0
        %771 = vmatpush1.bf16.msra.mxu0 0
        %772 = vmatprep.subr.bf16.mxu0 0
        %773 = vmatpush1.bf16.msra.mxu0 0
        %774 = vmatprep.subr.bf16.mxu0 0
        %775 = vmatpush1.bf16.msra.mxu0 0
        %776 = vmatprep.subr.bf16.mxu0 0
        %777 = vmatpush1.bf16.msra.mxu0 0
        %778 = vmatprep.subr.bf16.mxu0 0
        %779 = vmatpush1.bf16.msra.mxu0 0
        %780 = vmatprep.subr.bf16.mxu0 0
        %781 = vmatpush1.bf16.msra.mxu0 0
        %782 = vmatprep.subr.bf16.mxu0 0
        %783 = vmatpush1.bf16.msra.mxu0 0
        %784 = vmatprep.mubr.bf16.mxu0 0
        %785 = vmatmul.mubr.bf16.gmra.mrb[0].mxu0 %v655
        %v786 = vpop.f32.mrb[0].mxu0
        %v787 = vadd.f32 0.0, %v786
        %v788 = vpop.f32.mrb[0].mxu0
        %v789 = vadd.f32 0.0, %v788
        %v790 = vpop.f32.mrb[0].mxu0
        %v791 = vadd.f32 0.0, %v790
        %v792 = vpop.f32.mrb[0].mxu0
        %v793 = vadd.f32 0.0, %v792
        %794 = vdwg.mxu0
        %v795 = vld [vmem:[%s513] sm:$0xff]
        %v796 = vld [vmem:[%s513 + $0x8] sm:$0xff]
        %v797 = vld [vmem:[%s513 + $0x10] sm:$0xff]
        %v798 = vld [vmem:[%s513 + $0x18] sm:$0xff]
        %v799 = vld [vmem:[%s513 + $0x20] sm:$0xff]
        %v800 = vld [vmem:[%s513 + $0x28] sm:$0xff]
        %v801 = vld [vmem:[%s513 + $0x30] sm:$0xff]
        %v802 = vld [vmem:[%s513 + $0x38] sm:$0xff]
        %v803 = vld [vmem:[%s513 + $0x40] sm:$0xff]
        %v804 = vld [vmem:[%s513 + $0x48] sm:$0xff]
        %v805 = vld [vmem:[%s513 + $0x50] sm:$0xff]
        %v806 = vld [vmem:[%s513 + $0x58] sm:$0xff]
        %v807 = vld [vmem:[%s513 + $0x60] sm:$0xff]
        %v808 = vld [vmem:[%s513 + $0x68] sm:$0xff]
        %v809 = vld [vmem:[%s513 + $0x70] sm:$0xff]
        %v810 = vld [vmem:[%s513 + $0x78] sm:$0xff]
        %v827 = vunpack.c.l.b16 %v795
        %v828 = vunpack.c.h.b16 %v795
        %v829 = vunpack.c.l.b16 %v796
        %v830 = vunpack.c.h.b16 %v796
        %v831 = vunpack.c.l.b16 %v797
        %v832 = vunpack.c.h.b16 %v797
        %v833 = vunpack.c.l.b16 %v798
        %v834 = vunpack.c.h.b16 %v798
        %v835 = vunpack.c.l.b16 %v799
        %v836 = vunpack.c.h.b16 %v799
        %v837 = vunpack.c.l.b16 %v800
        %v838 = vunpack.c.h.b16 %v800
        %v839 = vunpack.c.l.b16 %v801
        %v840 = vunpack.c.h.b16 %v801
        %v841 = vunpack.c.l.b16 %v802
        %v842 = vunpack.c.h.b16 %v802
        %v843 = vunpack.c.l.b16 %v803
        %v844 = vunpack.c.h.b16 %v803
        %v845 = vunpack.c.l.b16 %v804
        %v846 = vunpack.c.h.b16 %v804
        %v847 = vunpack.c.l.b16 %v805
        %v848 = vunpack.c.h.b16 %v805
        %v849 = vunpack.c.l.b16 %v806
        %v850 = vunpack.c.h.b16 %v806
        %v851 = vunpack.c.l.b16 %v807
        %v852 = vunpack.c.h.b16 %v807
        %v853 = vunpack.c.l.b16 %v808
        %v854 = vunpack.c.h.b16 %v808
        %v855 = vunpack.c.l.b16 %v809
        %v856 = vunpack.c.h.b16 %v809
        %v857 = vunpack.c.l.b16 %v810
        %v858 = vunpack.c.h.b16 %v810
        %v859 = vpack.c.b16 %v829, %v827
        %v860 = vpack.c.b16 %v830, %v828
        %v861 = vpack.c.b16 %v833, %v831
        %v862 = vpack.c.b16 %v834, %v832
        %v863 = vpack.c.b16 %v837, %v835
        %v864 = vpack.c.b16 %v838, %v836
        %v865 = vpack.c.b16 %v841, %v839
        %v866 = vpack.c.b16 %v842, %v840
        %v867 = vpack.c.b16 %v845, %v843
        %v868 = vpack.c.b16 %v846, %v844
        %v869 = vpack.c.b16 %v849, %v847
        %v870 = vpack.c.b16 %v850, %v848
        %v871 = vpack.c.b16 %v853, %v851
        %v872 = vpack.c.b16 %v854, %v852
        %v873 = vpack.c.b16 %v857, %v855
        %v874 = vpack.c.b16 %v858, %v856
        %891 = vmatprep.subr.bf16.mxu0 %v860
        %892 = vmatpush1.bf16.msra.mxu0 %v859
        %893 = vmatprep.subr.bf16.mxu0 %v862
        %894 = vmatpush1.bf16.msra.mxu0 %v861
        %895 = vmatprep.subr.bf16.mxu0 %v864
        %896 = vmatpush1.bf16.msra.mxu0 %v863
        %897 = vmatprep.subr.bf16.mxu0 %v866
        %898 = vmatpush1.bf16.msra.mxu0 %v865
        %899 = vmatprep.subr.bf16.mxu0 %v868
        %900 = vmatpush1.bf16.msra.mxu0 %v867
        %901 = vmatprep.subr.bf16.mxu0 %v870
        %902 = vmatpush1.bf16.msra.mxu0 %v869
        %903 = vmatprep.subr.bf16.mxu0 %v872
        %904 = vmatpush1.bf16.msra.mxu0 %v871
        %905 = vmatprep.subr.bf16.mxu0 %v874
        %906 = vmatpush1.bf16.msra.mxu0 %v873
        %907 = vmatprep.subr.bf16.mxu0 0
        %908 = vmatpush1.bf16.msra.mxu0 0
        %909 = vmatprep.subr.bf16.mxu0 0
        %910 = vmatpush1.bf16.msra.mxu0 0
        %911 = vmatprep.subr.bf16.mxu0 0
        %912 = vmatpush1.bf16.msra.mxu0 0
        %913 = vmatprep.subr.bf16.mxu0 0
        %914 = vmatpush1.bf16.msra.mxu0 0
        %915 = vmatprep.subr.bf16.mxu0 0
        %916 = vmatpush1.bf16.msra.mxu0 0
        %917 = vmatprep.subr.bf16.mxu0 0
        %918 = vmatpush1.bf16.msra.mxu0 0
        %919 = vmatprep.subr.bf16.mxu0 0
        %920 = vmatpush1.bf16.msra.mxu0 0
        %921 = vmatprep.subr.bf16.mxu0 0
        %922 = vmatpush1.bf16.msra.mxu0 0
        %923 = vmatprep.mubr.bf16.mxu0 0
        %924 = vmatmul.mubr.bf16.gmra.mrb[0].mxu0 %v655
        %v925 = vpop.f32.mrb[0].mxu0
        %v926 = vadd.f32 0.0, %v925
        %v927 = vpop.f32.mrb[0].mxu0
        %v928 = vadd.f32 0.0, %v927
        %v929 = vpop.f32.mrb[0].mxu0
        %v930 = vadd.f32 0.0, %v929
        %v931 = vpop.f32.mrb[0].mxu0
        %v932 = vadd.f32 0.0, %v931
        %933 = vdwg.mxu0
        %v934 = vxor.u32 %v787, 2147483648
        %v935 = vxor.u32 %v789, 2147483648
        %v936 = vxor.u32 %v791, 2147483648
        %v937 = vxor.u32 %v793, 2147483648
        %v938 = vmul.f32 %v934, 1.442695
        %v939 = vpow.pop %v938
        %v940 = vmul.f32 %v935, 1.442695
        %v941 = vpow.pop %v940
        %v942 = vmul.f32 %v936, 1.442695
        %v943 = vpow.pop %v942
        %v944 = vmul.f32 %v937, 1.442695
        %v945 = vpow.pop %v944
        %v946 = vadd.f32 %v939, 1.0
        %v947 = vadd.f32 %v941, 1.0
        %v948 = vadd.f32 %v943, 1.0
        %v949 = vadd.f32 %v945, 1.0
        %v950 = vrcp.pop %v946
        %v951 = vmul.f32 1.0, %v950
        %v952 = vrcp.pop %v947
        %v953 = vmul.f32 1.0, %v952
        %v954 = vrcp.pop %v948
        %v955 = vmul.f32 1.0, %v954
        %v956 = vrcp.pop %v949
        %v957 = vmul.f32 1.0, %v956
        %v958 = vmul.f32 %v787, %v951
        %v959 = vmul.f32 %v789, %v953
        %v960 = vmul.f32 %v791, %v955
        %v961 = vmul.f32 %v793, %v957
        %v962 = vld [vmem:[#allocation2] sm:$0xff]
        %v963 = vld [vmem:[#allocation2 + $0x8] sm:$0xff]
        %v964 = vmul.f32 %v958, %v926
        %v965 = vmul.f32 %v959, %v928
        %v966 = vmul.f32 %v960, %v930
        %v967 = vmul.f32 %v961, %v932
        %v968 = vpack.c.bf16 %v966, %v964
        %v969 = vpack.c.bf16 %v967, %v965
        %v970 = vld [vmem:[%s570] sm:$0xf]
        %v971 = vld [vmem:[%s570 + $0x4] sm:$0xf]
        %v972 = vld [vmem:[%s570 + $0x8] sm:$0xf]
        %v973 = vld [vmem:[%s570 + $0xc] sm:$0xf]
        %v974 = vld [vmem:[%s570 + $0x10] sm:$0xf]
        %v975 = vld [vmem:[%s570 + $0x14] sm:$0xf]
        %v976 = vld [vmem:[%s570 + $0x18] sm:$0xf]
        %v977 = vld [vmem:[%s570 + $0x1c] sm:$0xf]
        %v978 = vld [vmem:[%s570 + $0x20] sm:$0xf]
        %v979 = vld [vmem:[%s570 + $0x24] sm:$0xf]
        %v980 = vld [vmem:[%s570 + $0x28] sm:$0xf]
        %v981 = vld [vmem:[%s570 + $0x2c] sm:$0xf]
        %v982 = vld [vmem:[%s570 + $0x30] sm:$0xf]
        %v983 = vld [vmem:[%s570 + $0x34] sm:$0xf]
        %v984 = vld [vmem:[%s570 + $0x38] sm:$0xf]
        %v985 = vld [vmem:[%s570 + $0x3c] sm:$0xf]
        %v986 = vld [vmem:[%s570 + $0x40] sm:$0xf]
        %v987 = vld [vmem:[%s570 + $0x44] sm:$0xf]
        %v988 = vld [vmem:[%s570 + $0x48] sm:$0xf]
        %v989 = vld [vmem:[%s570 + $0x4c] sm:$0xf]
        %v990 = vld [vmem:[%s570 + $0x50] sm:$0xf]
        %v991 = vld [vmem:[%s570 + $0x54] sm:$0xf]
        %v992 = vld [vmem:[%s570 + $0x58] sm:$0xf]
        %v993 = vld [vmem:[%s570 + $0x5c] sm:$0xf]
        %v994 = vld [vmem:[%s570 + $0x60] sm:$0xf]
        %v995 = vld [vmem:[%s570 + $0x64] sm:$0xf]
        %v996 = vld [vmem:[%s570 + $0x68] sm:$0xf]
        %v997 = vld [vmem:[%s570 + $0x6c] sm:$0xf]
        %v998 = vld [vmem:[%s570 + $0x70] sm:$0xf]
        %v999 = vld [vmem:[%s570 + $0x74] sm:$0xf]
        %v1000 = vld [vmem:[%s570 + $0x78] sm:$0xf]
        %v1001 = vld [vmem:[%s570 + $0x7c] sm:$0xf]
        %v1034 = vunpack.c.l.b16 %v970
        %v1035 = vunpack.c.l.b16 %v971
        %v1036 = vunpack.c.l.b16 %v972
        %v1037 = vunpack.c.l.b16 %v973
        %v1038 = vunpack.c.l.b16 %v974
        %v1039 = vunpack.c.l.b16 %v975
        %v1040 = vunpack.c.l.b16 %v976
        %v1041 = vunpack.c.l.b16 %v977
        %v1042 = vunpack.c.l.b16 %v978
        %v1043 = vunpack.c.l.b16 %v979
        %v1044 = vunpack.c.l.b16 %v980
        %v1045 = vunpack.c.l.b16 %v981
        %v1046 = vunpack.c.l.b16 %v982
        %v1047 = vunpack.c.l.b16 %v983
        %v1048 = vunpack.c.l.b16 %v984
        %v1049 = vunpack.c.l.b16 %v985
        %v1050 = vunpack.c.l.b16 %v986
        %v1051 = vunpack.c.l.b16 %v987
        %v1052 = vunpack.c.l.b16 %v988
        %v1053 = vunpack.c.l.b16 %v989
        %v1054 = vunpack.c.l.b16 %v990
        %v1055 = vunpack.c.l.b16 %v991
        %v1056 = vunpack.c.l.b16 %v992
        %v1057 = vunpack.c.l.b16 %v993
        %v1058 = vunpack.c.l.b16 %v994
        %v1059 = vunpack.c.l.b16 %v995
        %v1060 = vunpack.c.l.b16 %v996
        %v1061 = vunpack.c.l.b16 %v997
        %v1062 = vunpack.c.l.b16 %v998
        %v1063 = vunpack.c.l.b16 %v999
        %v1064 = vunpack.c.l.b16 %v1000
        %v1065 = vunpack.c.l.b16 %v1001
        %v1066 = vpack.c.b16 %v1035, %v1034
        %v1067 = vpack.c.b16 %v1037, %v1036
        %v1068 = vpack.c.b16 %v1039, %v1038
        %v1069 = vpack.c.b16 %v1041, %v1040
        %v1070 = vpack.c.b16 %v1043, %v1042
        %v1071 = vpack.c.b16 %v1045, %v1044
        %v1072 = vpack.c.b16 %v1047, %v1046
        %v1073 = vpack.c.b16 %v1049, %v1048
        %v1074 = vpack.c.b16 %v1051, %v1050
        %v1075 = vpack.c.b16 %v1053, %v1052
        %v1076 = vpack.c.b16 %v1055, %v1054
        %v1077 = vpack.c.b16 %v1057, %v1056
        %v1078 = vpack.c.b16 %v1059, %v1058
        %v1079 = vpack.c.b16 %v1061, %v1060
        %v1080 = vpack.c.b16 %v1063, %v1062
        %v1081 = vpack.c.b16 %v1065, %v1064
        %1098 = vmatprep.subr.bf16.mxu0 0
        %1099 = vmatpush1.bf16.msra.mxu0 %v1066
        %1100 = vmatprep.subr.bf16.mxu0 0
        %1101 = vmatpush1.bf16.msra.mxu0 %v1067
        %1102 = vmatprep.subr.bf16.mxu0 0
        %1103 = vmatpush1.bf16.msra.mxu0 %v1068
        %1104 = vmatprep.subr.bf16.mxu0 0
        %1105 = vmatpush1.bf16.msra.mxu0 %v1069
        %1106 = vmatprep.subr.bf16.mxu0 0
        %1107 = vmatpush1.bf16.msra.mxu0 %v1070
        %1108 = vmatprep.subr.bf16.mxu0 0
        %1109 = vmatpush1.bf16.msra.mxu0 %v1071
        %1110 = vmatprep.subr.bf16.mxu0 0
        %1111 = vmatpush1.bf16.msra.mxu0 %v1072
        %1112 = vmatprep.subr.bf16.mxu0 0
        %1113 = vmatpush1.bf16.msra.mxu0 %v1073
        %1114 = vmatprep.subr.bf16.mxu0 0
        %1115 = vmatpush1.bf16.msra.mxu0 %v1074
        %1116 = vmatprep.subr.bf16.mxu0 0
        %1117 = vmatpush1.bf16.msra.mxu0 %v1075
        %1118 = vmatprep.subr.bf16.mxu0 0
        %1119 = vmatpush1.bf16.msra.mxu0 %v1076
        %1120 = vmatprep.subr.bf16.mxu0 0
        %1121 = vmatpush1.bf16.msra.mxu0 %v1077
        %1122 = vmatprep.subr.bf16.mxu0 0
        %1123 = vmatpush1.bf16.msra.mxu0 %v1078
        %1124 = vmatprep.subr.bf16.mxu0 0
        %1125 = vmatpush1.bf16.msra.mxu0 %v1079
        %1126 = vmatprep.subr.bf16.mxu0 0
        %1127 = vmatpush1.bf16.msra.mxu0 %v1080
        %1128 = vmatprep.subr.bf16.mxu0 0
        %1129 = vmatpush1.bf16.msra.mxu0 %v1081
        %1130 = vmatprep.mubr.bf16.mxu0 %v969
        %1131 = vmatmul.mubr.bf16.gmra.mrb[0].mxu0 %v968
        %v1132 = vpop.f32.mrb[0].mxu0
        %v1133 = vadd.f32 0.0, %v1132
        %v1134 = vpop.f32.mrb[0].mxu0
        %v1135 = vpop.f32.mrb[0].mxu0
        %v1136 = vadd.f32 0.0, %v1135
        %v1137 = vpop.f32.mrb[0].mxu0
        %1138 = vdwg.mxu0
        %v1139 = vadd.f32 %v962, %v1133
        %v1140 = vadd.f32 %v963, %v1136
        %1141 = vst [vmem:[#allocation2] sm:$0xff] %v1139
        %1142 = vst [vmem:[#allocation2 + $0x8] sm:$0xff] %v1140
        %p1143 = scmp.eq.s32.totalorder %s27, 1
        // Predicated region
        $region133: #{decoder_layer.3} parent=119 // pred_check
          %p1144 = pneg %p1143
        $region134: #{decoder_layer.3} parent=119 // pred_check_branch
          %1146 = sbr.rel (%p1144) target = $region136
        $region135: #{decoder_layer.3} parent=119 // pred_region
          %v1147 = vld [vmem:[#allocation3] sm:$0xff]
          %v1148 = vld [vmem:[#allocation3 + $0x8] sm:$0xff]
          %v1149 = vld [vmem:[#allocation2] sm:$0xff]
          %v1150 = vld [vmem:[#allocation2 + $0x8] sm:$0xff]
          %v1151 = vadd.f32 %v1147, %v1149
          %v1152 = vadd.f32 %v1148, %v1150
          %1153 = vst [vmem:[%s557] sm:$0xff] %v1151
          %1154 = vst [vmem:[%s557 + $0x8] sm:$0xff] %v1152
        $region136: #{decoder_layer.3} parent=119 // pred_fallthru
          _
        %s1155 = sand.u32 %s230, 1
        %s1156 = scalar_lea.sflag [#allocation8], %s1155
        %s1157 = sand.u32 %s230, 1
        %s1158 = smul.addr %s1157, 16
        %s1159 = scalar_lea.vmem [#allocation7], %s1158
        // Predicated region
        $region137: #{decoder_layer.3} parent=119 // pred_check
          %p1160 = pneg %p240
        $region138: #{decoder_layer.3} parent=119 // pred_check_branch
          %1162 = sbr.rel (%p1160) target = $region140
        $region139: #{decoder_layer.3} parent=119 // pred_region
          %s1163 = smul.u32 2, %s26
          %s1165 = ssub.s32 256, 256
          %1166 = vsyncadd %s1156, %s1165
          %s1167 = smul.addr %s1163, 128
          %s1168 = scalar_lea.hbm %s8, %s1167
          %s1169 = sshll.u32 %s1159, 4
          %s1170 = int_to_ptr.vmem [resolvable:$true] %s1169
          %1175 = dma.vmem_to_hbm [thread:$0]  %s1170, 256, %s1168, %s1156, 128, 128, 8
        $region140: #{decoder_layer.3} parent=119 // pred_fallthru
          _
      $region120: #{decoder_layer.3} parent=5 // pred_fallthru
        _
      %p1176 = scmp.le.s32.totalorder 2, %s17
      // Predicated region
      $region141: #{decoder_layer.3} parent=5 // pred_check
        %p1177 = pneg %p1176
      $region142: #{decoder_layer.3} parent=5 // pred_check_branch
        %1179 = sbr.rel (%p1177) target = $region144
      $region143: #{decoder_layer.3} parent=5 // pred_region
        %s1180 = ssub.s32 %s17, 2
        // Predicated region
        $region145: #{decoder_layer.3} parent=143 // pred_check
          %p1181 = pneg %p246
        $region146: #{decoder_layer.3} parent=143 // pred_check_branch
          %1183 = sbr.rel (%p1181) target = $region148
        $region147: #{decoder_layer.3} parent=143 // pred_region
          %s1184 = sand.u32 %s231, 1
          %s1185 = scalar_lea.sflag [#allocation8], %s1184
          %s1186 = sand.u32 %s231, 1
          %s1187 = smul.addr %s1186, 16
          %s1188 = scalar_lea.vmem [#allocation7], %s1187
          %1189 = dma.done %s1185, 256
        $region148: #{decoder_layer.3} parent=143 // pred_fallthru
          _
      $region144: #{decoder_layer.3} parent=5 // pred_fallthru
        _
    $region6: #{decoder_layer.3} parent=1 // loop_footer
      %s21 = sadd.s32 1, %s17
    $region7: #{decoder_layer.3} parent=1 // loop_footer_branch
      %16 = sbr.rel target = $region3
    $region8: #{decoder_layer.3} parent=1 // loop_exit
      _
    %1190 = vsyncpa [#allocation8], 1
    %s1191 = scalar_lea.sflag [#allocation8], 1
    %1192 = vsyncpa %s1191, 1

</llo_original>
